<compile_context>
chip_gen: v7x
topology: tpu7x:2x2x1
jax: 0.10.0
libtpu: 0.0.40
codegen_flags: <defaults>
</compile_context>

<pallas_src>
import functools

import jax
import jax.numpy as jnp
from jax.experimental import pallas as pl
from jax.experimental.pallas import tpu as pltpu


def _round_up(x, m):
    return (x + m - 1) // m * m


def _fcn_head_kernel(x_ref, w3_ref, bias_ref, wf_ref, bf_ref, out_ref, acc_ref,
                     *, wp, n_tile):
    """Grid = (batch, spatial_tile, cin_tile); cin_tile is the reduction axis.

    x_ref:    (1, 1, CIN_T, SLAB)  bf16  halo'd row-flattened input slab,
                                         SLAB = n_tile + 2*wp + 2
    w3_ref:   (9, Cint, CIN_T)     bf16  BN-scale-folded 3x3 weights (tap-major)
    bias_ref: (Cint, 1)            f32   folded BatchNorm bias
    wf_ref:   (Cls_pad, Cint)      bf16  1x1 conv weights (transposed, padded)
    bf_ref:   (Cls_pad, 1)         f32   1x1 conv bias (padded)
    out_ref:  (1, Cls_pad, n_tile) f32
    acc_ref:  (Cint, n_tile)       f32   VMEM scratch accumulator
    """
    k = pl.program_id(2)

    @pl.when(k == 0)
    def _init():
        acc_ref[...] = jnp.zeros_like(acc_ref)

    x = x_ref[0, 0]                                     # (CIN_T, SLAB)

    # 3x3 conv = 9 tap matmuls on the MXU, accumulated into VMEM scratch.
    # Tap offsets are static lane offsets into the halo'd slab.  (If wp were a
    # multiple of 128 the dy offsets would be lane-aligned; for generic W each
    # tap slice costs one lane-shift of the (CIN_T, n_tile) operand.)
    for t in range(9):
        off = (t // 3) * wp + (t % 3)
        patch = x[:, off:off + n_tile]                  # (CIN_T, n_tile)
        acc_ref[...] += jnp.dot(w3_ref[t], patch,
                                preferred_element_type=jnp.float32)

    @pl.when(k == pl.num_programs(2) - 1)
    def _epilogue():
        # Folded BN bias + ReLU in f32 (keep elementwise f32 for v5e's VPU).
        y = jnp.maximum(acc_ref[...] + bias_ref[...], 0.0)
        # Fused 1x1 conv epilogue: bf16 operands, f32 accumulation.
        out = jnp.dot(wf_ref[...], y.astype(jnp.bfloat16),
                      preferred_element_type=jnp.float32) + bf_ref[...]
        out_ref[0] = out.astype(out_ref.dtype)


def fcn_head_forward(x_nchw, w3_hwio, bn_gamma, bn_beta, bn_mean, bn_var,
                     wf, bf, *, eps=1e-5, n_tile=512, cin_tile=512):
    """FCNHead(num_convs=1) inference forward.

    out = Conv1x1(ReLU(BN(Conv3x3(x)))); the module's dropout_rate is unused
    by its forward(), so no dropout is applied (inference semantics).

    x_nchw: (B, Cin, H, W) float32.  Returns (B, num_classes, H, W) float32.
    n_tile:   spatial tile (lanes), rounded to a multiple of 128.
    cin_tile: Cin reduction tile; must divide Cin and be a multiple of 128
              (otherwise the whole Cin is taken in one step).
    """
    B, Cin, H, W = x_nchw.shape
    Cint = w3_hwio.shape[-1]
    Cls = wf.shape[-1]
    Cls_pad = _round_up(Cls, 8)          # dense sublanes on the final store
    Wp = W + 2
    N = H * Wp

    # --- tiling choices -----------------------------------------------------
    n_tile = _round_up(min(n_tile, _round_up(N, 128)), 128)
    num_s = pl.cdiv(N, n_tile)
    n_pad = num_s * n_tile
    halo = 2 * Wp + 2                    # max tap offset (dy=2, dx=2)
    slab = n_tile + halo

    if cin_tile >= Cin or Cin % cin_tile != 0 or cin_tile % 128 != 0:
        cin_tile = Cin
    num_k = Cin // cin_tile

    # --- fold BatchNorm (inference) into the 3x3 conv ------------------------
    scale = bn_gamma / jnp.sqrt(bn_var + eps)
    bias = (bn_beta - bn_mean * scale).reshape(Cint, 1).astype(jnp.float32)
    w3s = w3_hwio * scale[None, None, None, :]                       # (3,3,Cin,Cint)
    w3t = jnp.transpose(w3s, (0, 1, 3, 2)).reshape(9, Cint, Cin).astype(jnp.bfloat16)

    wf_p = jnp.pad(wf, ((0, 0), (0, Cls_pad - Cls)))
    bf_p = jnp.pad(bf, ((0, Cls_pad - Cls),))
    wf_t = jnp.transpose(wf_p, (1, 0)).astype(jnp.bfloat16)          # (Cls_pad, Cint)
    bf_b = bf_p.reshape(Cls_pad, 1).astype(jnp.float32)

    # --- prepare halo'd input slabs ------------------------------------------
    # NCHW stays NCHW: zero-pad H (1 top, 2 bottom) and W (1, 1), flatten H*W.
    x_pad = jnp.pad(x_nchw.astype(jnp.float32), ((0, 0), (0, 0), (1, 2), (1, 1)))
    x_flat = x_pad.reshape(B, Cin, (H + 3) * Wp).astype(jnp.bfloat16)
    l_need = n_pad + halo
    if x_flat.shape[-1] < l_need:
        x_flat = jnp.pad(x_flat, ((0, 0), (0, 0), (0, l_need - x_flat.shape[-1])))
    # Non-overlapping slabs, each carrying its own halo (duplicates only
    # `halo` lanes per tile) so every grid block is a plain Blocked window.
    x_slabs = jnp.stack(
        [x_flat[:, :, s * n_tile:s * n_tile + slab] for s in range(num_s)],
        axis=1)                                          # (B, num_s, Cin, slab)

    kernel = functools.partial(_fcn_head_kernel, wp=Wp, n_tile=n_tile)

    flops = B * (2 * n_pad * Cin * Cint * 9 + 2 * n_pad * Cint * Cls_pad)
    bytes_accessed = (x_slabs.size * 2 + B * Cls_pad * n_pad * 4
                      + 9 * Cint * Cin * 2
                      + (Cint + Cls_pad * Cint + Cls_pad) * 4)

    # Per-step VMEM footprint (double-buffered blocks + scratch accumulator);
    # cap at 48 MiB so it stays inside v7x's 64 MiB physical VMEM with headroom.
    block_bytes = (2 * cin_tile * slab * 2            # x slab blocks (bf16)
                   + 2 * 9 * Cint * cin_tile * 2      # 3x3 weight blocks (bf16)
                   + 2 * Cls_pad * n_tile * 4         # output blocks (f32)
                   + Cint * n_tile * 4                # accumulator scratch
                   + 2 * (Cint + Cls_pad * Cint + Cls_pad) * 4)
    vmem_limit = int(min(max(3 * block_bytes, 32 * 2**20), 48 * 2**20))

    out_flat = pl.pallas_call(
        kernel,
        out_shape=jax.ShapeDtypeStruct((B, Cls_pad, n_pad), jnp.float32),
        grid=(B, num_s, num_k),
        in_specs=[
            pl.BlockSpec((1, 1, cin_tile, slab), lambda b, s, k: (b, s, k, 0)),
            pl.BlockSpec((9, Cint, cin_tile), lambda b, s, k: (0, 0, k)),
            pl.BlockSpec((Cint, 1), lambda b, s, k: (0, 0)),
            pl.BlockSpec((Cls_pad, Cint), lambda b, s, k: (0, 0)),
            pl.BlockSpec((Cls_pad, 1), lambda b, s, k: (0, 0)),
        ],
        out_specs=pl.BlockSpec((1, Cls_pad, n_tile), lambda b, s, k: (b, 0, s)),
        scratch_shapes=[pltpu.VMEM((Cint, n_tile), jnp.float32)],
        compiler_params=pltpu.CompilerParams(
            dimension_semantics=("parallel", "parallel", "arbitrary"),
            vmem_limit_bytes=vmem_limit),
        cost_estimate=pl.CostEstimate(flops=flops, transcendentals=0,
                                      bytes_accessed=bytes_accessed),
    )(x_slabs, w3t, bias, wf_t, bf_b)

    # Drop the class padding, the spatial-tile padding, and the 2 garbage
    # columns per row (those lanes wrap into the next image row for the
    # dx=1,2 taps and MUST never be returned).
    return out_flat[:, :Cls, :N].reshape(B, Cls, H, Wp)[:, :, :, :W]


def _reference_forward(x_nchw, w3_hwio, bn_gamma, bn_beta, bn_mean, bn_var,
                       wf, bf, *, eps=1e-5):
    """Plain-JAX reference mirroring the kernel's bf16 quantization points."""
    scale = bn_gamma / jnp.sqrt(bn_var + eps)
    bias = bn_beta - bn_mean * scale
    w3s = (w3_hwio * scale[None, None, None, :]).astype(jnp.bfloat16).astype(jnp.float32)
    xq = x_nchw.astype(jnp.bfloat16).astype(jnp.float32)
    xh = jnp.transpose(xq, (0, 2, 3, 1))
    y = jax.lax.conv_general_dilated(
        xh, w3s, window_strides=(1, 1), padding=((1, 1), (1, 1)),
        dimension_numbers=("NHWC", "HWIO", "NHWC"),
        precision=jax.lax.Precision.HIGHEST)
    y = jnp.maximum(y + bias, 0.0)
    yq = y.astype(jnp.bfloat16).astype(jnp.float32)
    wfq = wf.astype(jnp.bfloat16).astype(jnp.float32)
    out = jnp.einsum("bhwc,cd->bhwd", yq, wfq,
                     precision=jax.lax.Precision.HIGHEST) + bf
    return jnp.transpose(out, (0, 3, 1, 2))


if __name__ == "__main__":
    # Small demo shapes: in_channels=256 -> inter_channels=64, num_classes=6.
    B, Cin, H, W = 2, 256, 16, 16
    Cint = Cin // 4
    Cls = 6

    key = jax.random.PRNGKey(0)
    ks = jax.random.split(key, 8)
    x = jax.random.normal(ks[0], (B, Cin, H, W), jnp.float32)

    # Deterministic synthetic parameters (shapes match the PyTorch module).
    w3 = jax.random.normal(ks[1], (3, 3, Cin, Cint), jnp.float32) * 0.05   # HWIO
    gamma = jax.random.uniform(ks[2], (Cint,), jnp.float32, 0.5, 1.5)
    beta = jax.random.normal(ks[3], (Cint,), jnp.float32) * 0.1
    rmean = jax.random.normal(ks[4], (Cint,), jnp.float32) * 0.1
    rvar = jax.random.uniform(ks[5], (Cint,), jnp.float32, 0.5, 1.5)
    wf = jax.random.normal(ks[6], (Cint, Cls), jnp.float32) * 0.1
    bf = jax.random.normal(ks[7], (Cls,), jnp.float32) * 0.1

    # Small tiles so the demo exercises the spatial-tile and Cin-reduction
    # grid axes (production defaults are n_tile=512, cin_tile=512).
    out = fcn_head_forward(x, w3, gamma, beta, rmean, rvar, wf, bf,
                           n_tile=128, cin_tile=128)
    out = jax.block_until_ready(out)
    assert out.shape == (B, Cls, H, W), out.shape

    ref = _reference_forward(x, w3, gamma, beta, rmean, rvar, wf, bf)
    max_err = float(jnp.max(jnp.abs(out - ref)))
    assert jnp.allclose(out, ref, rtol=5e-3, atol=5e-3), max_err

    print("KERNEL_OK")
</pallas_src>

<mosaic_0001>
module attributes {stable_mosaic.version = 11 : i64} {
  func.func @_fcn_head_kernel(%arg0: i32, %arg1: i32, %arg2: i32, %arg3: memref<1x1x128x166xbf16, #tpu.memory_space<vmem>>, %arg4: memref<9x64x128xbf16, #tpu.memory_space<vmem>>, %arg5: memref<64x1xf32, #tpu.memory_space<vmem>>, %arg6: memref<8x64xbf16, #tpu.memory_space<vmem>>, %arg7: memref<8x1xf32, #tpu.memory_space<vmem>>, %arg8: memref<1x8x128xf32, #tpu.memory_space<vmem>>, %arg9: memref<64x128xf32, #tpu.memory_space<vmem>>) attributes {dimension_semantics = [#tpu.dimension_semantics<parallel>, #tpu.dimension_semantics<parallel>, #tpu.dimension_semantics<arbitrary>], iteration_bounds = array<i64: 2, 3, 2>, scalar_prefetch = 0 : i64, scratch_operands = 1 : i64, tpu.core_type = #tpu.core_type<tc>, window_params = [{transform_indices = @transform_0, window_bounds = array<i64: 1, 1, 128, 166>}, {transform_indices = @transform_1, window_bounds = array<i64: 9, 64, 128>}, {pipeline_mode = #tpu.pipeline_mode<synchronous>, transform_indices = @transform_2, window_bounds = array<i64: 64, 1>}, {pipeline_mode = #tpu.pipeline_mode<synchronous>, transform_indices = @transform_3, window_bounds = array<i64: 8, 64>}, {pipeline_mode = #tpu.pipeline_mode<synchronous>, transform_indices = @transform_4, window_bounds = array<i64: 8, 1>}, {transform_indices = @transform_5, window_bounds = array<i64: 1, 8, 128>}]} {
    %c0_i32 = arith.constant 0 : i32
    %0 = arith.cmpi eq, %arg2, %c0_i32 : i32
    %1 = arith.extui %0 : i1 to i32
    %c0_i32_0 = arith.constant 0 : i32
    %2 = arith.cmpi ne, %1, %c0_i32_0 : i32
    scf.if %2 {
      %cst_68 = arith.constant 0.000000e+00 : f32
      %71 = vector.broadcast %cst_68 : f32 to vector<64x128xf32>
      %c0_69 = arith.constant 0 : index
      %c0_70 = arith.constant 0 : index
      %72 = vector.load %arg9[%c0_69, %c0_70] : memref<64x128xf32, #tpu.memory_space<vmem>>, vector<64x128xf32>
      tpu.vector_store %arg9[%c0_69, %c0_70], %71 {strides = array<i32>} : memref<64x128xf32, #tpu.memory_space<vmem>>, vector<64x128xf32>,
    } else {
    }
    %c0 = arith.constant 0 : index
    %c0_1 = arith.constant 0 : index
    %c0_2 = arith.constant 0 : index
    %c0_3 = arith.constant 0 : index
    %3 = vector.load %arg3[%c0, %c0_1, %c0_2, %c0_3] : memref<1x1x128x166xbf16, #tpu.memory_space<vmem>>, vector<1x1x128x166xbf16>
    %4 = vector.shape_cast %3 : vector<1x1x128x166xbf16> to vector<128x166xbf16>
    %5 = vector.extract_strided_slice %4 {offsets = [0, 0], sizes = [128, 128], strides = [1, 1]} : vector<128x166xbf16> to vector<128x128xbf16>
    %c0_4 = arith.constant 0 : index
    %c0_5 = arith.constant 0 : index
    %6 = vector.load %arg9[%c0_4, %c0_5] : memref<64x128xf32, #tpu.memory_space<vmem>>, vector<64x128xf32>
    %c0_6 = arith.constant 0 : index
    %c0_7 = arith.constant 0 : index
    %c0_8 = arith.constant 0 : index
    %7 = vector.load %arg4[%c0_6, %c0_7, %c0_8] : memref<9x64x128xbf16, #tpu.memory_space<vmem>>, vector<1x64x128xbf16>
    %8 = vector.shape_cast %7 : vector<1x64x128xbf16> to vector<64x128xbf16>
    %cst = arith.constant dense<0.000000e+00> : vector<64x128xf32>
    %9 = tpu.matmul %8, %5, %cst {dimension_numbers = #tpu.dot_dimension_numbers<[1], [0], [0], [1], [0, 0, 1, 1], [], []>} : vector<64x128xbf16>, vector<128x128xbf16>, vector<64x128xf32> -> vector<64x128xf32>
    %10 = arith.addf %6, %9 : vector<64x128xf32>
    %c0_9 = arith.constant 0 : index
    %c0_10 = arith.constant 0 : index
    %11 = vector.load %arg9[%c0_9, %c0_10] : memref<64x128xf32, #tpu.memory_space<vmem>>, vector<64x128xf32>
    tpu.vector_store %arg9[%c0_9, %c0_10], %10 {strides = array<i32>} : memref<64x128xf32, #tpu.memory_space<vmem>>, vector<64x128xf32>,
    %12 = vector.extract_strided_slice %4 {offsets = [0, 1], sizes = [128, 128], strides = [1, 1]} : vector<128x166xbf16> to vector<128x128xbf16>
    %c0_11 = arith.constant 0 : index
    %c0_12 = arith.constant 0 : index
    %13 = vector.load %arg9[%c0_11, %c0_12] : memref<64x128xf32, #tpu.memory_space<vmem>>, vector<64x128xf32>
    %c1 = arith.constant 1 : index
    %c0_13 = arith.constant 0 : index
    %c0_14 = arith.constant 0 : index
    %14 = vector.load %arg4[%c1, %c0_13, %c0_14] : memref<9x64x128xbf16, #tpu.memory_space<vmem>>, vector<1x64x128xbf16>
    %15 = vector.shape_cast %14 : vector<1x64x128xbf16> to vector<64x128xbf16>
    %cst_15 = arith.constant dense<0.000000e+00> : vector<64x128xf32>
    %16 = tpu.matmul %15, %12, %cst_15 {dimension_numbers = #tpu.dot_dimension_numbers<[1], [0], [0], [1], [0, 0, 1, 1], [], []>} : vector<64x128xbf16>, vector<128x128xbf16>, vector<64x128xf32> -> vector<64x128xf32>
    %17 = arith.addf %13, %16 : vector<64x128xf32>
    %c0_16 = arith.constant 0 : index
    %c0_17 = arith.constant 0 : index
    %18 = vector.load %arg9[%c0_16, %c0_17] : memref<64x128xf32, #tpu.memory_space<vmem>>, vector<64x128xf32>
    tpu.vector_store %arg9[%c0_16, %c0_17], %17 {strides = array<i32>} : memref<64x128xf32, #tpu.memory_space<vmem>>, vector<64x128xf32>,
    %19 = vector.extract_strided_slice %4 {offsets = [0, 2], sizes = [128, 128], strides = [1, 1]} : vector<128x166xbf16> to vector<128x128xbf16>
    %c0_18 = arith.constant 0 : index
    %c0_19 = arith.constant 0 : index
    %20 = vector.load %arg9[%c0_18, %c0_19] : memref<64x128xf32, #tpu.memory_space<vmem>>, vector<64x128xf32>
    %c2 = arith.constant 2 : index
    %c0_20 = arith.constant 0 : index
    %c0_21 = arith.constant 0 : index
    %21 = vector.load %arg4[%c2, %c0_20, %c0_21] : memref<9x64x128xbf16, #tpu.memory_space<vmem>>, vector<1x64x128xbf16>
    %22 = vector.shape_cast %21 : vector<1x64x128xbf16> to vector<64x128xbf16>
    %cst_22 = arith.constant dense<0.000000e+00> : vector<64x128xf32>
    %23 = tpu.matmul %22, %19, %cst_22 {dimension_numbers = #tpu.dot_dimension_numbers<[1], [0], [0], [1], [0, 0, 1, 1], [], []>} : vector<64x128xbf16>, vector<128x128xbf16>, vector<64x128xf32> -> vector<64x128xf32>
    %24 = arith.addf %20, %23 : vector<64x128xf32>
    %c0_23 = arith.constant 0 : index
    %c0_24 = arith.constant 0 : index
    %25 = vector.load %arg9[%c0_23, %c0_24] : memref<64x128xf32, #tpu.memory_space<vmem>>, vector<64x128xf32>
    tpu.vector_store %arg9[%c0_23, %c0_24], %24 {strides = array<i32>} : memref<64x128xf32, #tpu.memory_space<vmem>>, vector<64x128xf32>,
    %26 = vector.extract_strided_slice %4 {offsets = [0, 18], sizes = [128, 128], strides = [1, 1]} : vector<128x166xbf16> to vector<128x128xbf16>
    %c0_25 = arith.constant 0 : index
    %c0_26 = arith.constant 0 : index
    %27 = vector.load %arg9[%c0_25, %c0_26] : memref<64x128xf32, #tpu.memory_space<vmem>>, vector<64x128xf32>
    %c3 = arith.constant 3 : index
    %c0_27 = arith.constant 0 : index
    %c0_28 = arith.constant 0 : index
    %28 = vector.load %arg4[%c3, %c0_27, %c0_28] : memref<9x64x128xbf16, #tpu.memory_space<vmem>>, vector<1x64x128xbf16>
    %29 = vector.shape_cast %28 : vector<1x64x128xbf16> to vector<64x128xbf16>
    %cst_29 = arith.constant dense<0.000000e+00> : vector<64x128xf32>
    %30 = tpu.matmul %29, %26, %cst_29 {dimension_numbers = #tpu.dot_dimension_numbers<[1], [0], [0], [1], [0, 0, 1, 1], [], []>} : vector<64x128xbf16>, vector<128x128xbf16>, vector<64x128xf32> -> vector<64x128xf32>
    %31 = arith.addf %27, %30 : vector<64x128xf32>
    %c0_30 = arith.constant 0 : index
    %c0_31 = arith.constant 0 : index
    %32 = vector.load %arg9[%c0_30, %c0_31] : memref<64x128xf32, #tpu.memory_space<vmem>>, vector<64x128xf32>
    tpu.vector_store %arg9[%c0_30, %c0_31], %31 {strides = array<i32>} : memref<64x128xf32, #tpu.memory_space<vmem>>, vector<64x128xf32>,
    %33 = vector.extract_strided_slice %4 {offsets = [0, 19], sizes = [128, 128], strides = [1, 1]} : vector<128x166xbf16> to vector<128x128xbf16>
    %c0_32 = arith.constant 0 : index
    %c0_33 = arith.constant 0 : index
    %34 = vector.load %arg9[%c0_32, %c0_33] : memref<64x128xf32, #tpu.memory_space<vmem>>, vector<64x128xf32>
    %c4 = arith.constant 4 : index
    %c0_34 = arith.constant 0 : index
    %c0_35 = arith.constant 0 : index
    %35 = vector.load %arg4[%c4, %c0_34, %c0_35] : memref<9x64x128xbf16, #tpu.memory_space<vmem>>, vector<1x64x128xbf16>
    %36 = vector.shape_cast %35 : vector<1x64x128xbf16> to vector<64x128xbf16>
    %cst_36 = arith.constant dense<0.000000e+00> : vector<64x128xf32>
    %37 = tpu.matmul %36, %33, %cst_36 {dimension_numbers = #tpu.dot_dimension_numbers<[1], [0], [0], [1], [0, 0, 1, 1], [], []>} : vector<64x128xbf16>, vector<128x128xbf16>, vector<64x128xf32> -> vector<64x128xf32>
    %38 = arith.addf %34, %37 : vector<64x128xf32>
    %c0_37 = arith.constant 0 : index
    %c0_38 = arith.constant 0 : index
    %39 = vector.load %arg9[%c0_37, %c0_38] : memref<64x128xf32, #tpu.memory_space<vmem>>, vector<64x128xf32>
    tpu.vector_store %arg9[%c0_37, %c0_38], %38 {strides = array<i32>} : memref<64x128xf32, #tpu.memory_space<vmem>>, vector<64x128xf32>,
    %40 = vector.extract_strided_slice %4 {offsets = [0, 20], sizes = [128, 128], strides = [1, 1]} : vector<128x166xbf16> to vector<128x128xbf16>
    %c0_39 = arith.constant 0 : index
    %c0_40 = arith.constant 0 : index
    %41 = vector.load %arg9[%c0_39, %c0_40] : memref<64x128xf32, #tpu.memory_space<vmem>>, vector<64x128xf32>
    %c5 = arith.constant 5 : index
    %c0_41 = arith.constant 0 : index
    %c0_42 = arith.constant 0 : index
    %42 = vector.load %arg4[%c5, %c0_41, %c0_42] : memref<9x64x128xbf16, #tpu.memory_space<vmem>>, vector<1x64x128xbf16>
    %43 = vector.shape_cast %42 : vector<1x64x128xbf16> to vector<64x128xbf16>
    %cst_43 = arith.constant dense<0.000000e+00> : vector<64x128xf32>
    %44 = tpu.matmul %43, %40, %cst_43 {dimension_numbers = #tpu.dot_dimension_numbers<[1], [0], [0], [1], [0, 0, 1, 1], [], []>} : vector<64x128xbf16>, vector<128x128xbf16>, vector<64x128xf32> -> vector<64x128xf32>
    %45 = arith.addf %41, %44 : vector<64x128xf32>
    %c0_44 = arith.constant 0 : index
    %c0_45 = arith.constant 0 : index
    %46 = vector.load %arg9[%c0_44, %c0_45] : memref<64x128xf32, #tpu.memory_space<vmem>>, vector<64x128xf32>
    tpu.vector_store %arg9[%c0_44, %c0_45], %45 {strides = array<i32>} : memref<64x128xf32, #tpu.memory_space<vmem>>, vector<64x128xf32>,
    %47 = vector.extract_strided_slice %4 {offsets = [0, 36], sizes = [128, 128], strides = [1, 1]} : vector<128x166xbf16> to vector<128x128xbf16>
    %c0_46 = arith.constant 0 : index
    %c0_47 = arith.constant 0 : index
    %48 = vector.load %arg9[%c0_46, %c0_47] : memref<64x128xf32, #tpu.memory_space<vmem>>, vector<64x128xf32>
    %c6 = arith.constant 6 : index
    %c0_48 = arith.constant 0 : index
    %c0_49 = arith.constant 0 : index
    %49 = vector.load %arg4[%c6, %c0_48, %c0_49] : memref<9x64x128xbf16, #tpu.memory_space<vmem>>, vector<1x64x128xbf16>
    %50 = vector.shape_cast %49 : vector<1x64x128xbf16> to vector<64x128xbf16>
    %cst_50 = arith.constant dense<0.000000e+00> : vector<64x128xf32>
    %51 = tpu.matmul %50, %47, %cst_50 {dimension_numbers = #tpu.dot_dimension_numbers<[1], [0], [0], [1], [0, 0, 1, 1], [], []>} : vector<64x128xbf16>, vector<128x128xbf16>, vector<64x128xf32> -> vector<64x128xf32>
    %52 = arith.addf %48, %51 : vector<64x128xf32>
    %c0_51 = arith.constant 0 : index
    %c0_52 = arith.constant 0 : index
    %53 = vector.load %arg9[%c0_51, %c0_52] : memref<64x128xf32, #tpu.memory_space<vmem>>, vector<64x128xf32>
    tpu.vector_store %arg9[%c0_51, %c0_52], %52 {strides = array<i32>} : memref<64x128xf32, #tpu.memory_space<vmem>>, vector<64x128xf32>,
    %54 = vector.extract_strided_slice %4 {offsets = [0, 37], sizes = [128, 128], strides = [1, 1]} : vector<128x166xbf16> to vector<128x128xbf16>
    %c0_53 = arith.constant 0 : index
    %c0_54 = arith.constant 0 : index
    %55 = vector.load %arg9[%c0_53, %c0_54] : memref<64x128xf32, #tpu.memory_space<vmem>>, vector<64x128xf32>
    %c7 = arith.constant 7 : index
    %c0_55 = arith.constant 0 : index
    %c0_56 = arith.constant 0 : index
    %56 = vector.load %arg4[%c7, %c0_55, %c0_56] : memref<9x64x128xbf16, #tpu.memory_space<vmem>>, vector<1x64x128xbf16>
    %57 = vector.shape_cast %56 : vector<1x64x128xbf16> to vector<64x128xbf16>
    %cst_57 = arith.constant dense<0.000000e+00> : vector<64x128xf32>
    %58 = tpu.matmul %57, %54, %cst_57 {dimension_numbers = #tpu.dot_dimension_numbers<[1], [0], [0], [1], [0, 0, 1, 1], [], []>} : vector<64x128xbf16>, vector<128x128xbf16>, vector<64x128xf32> -> vector<64x128xf32>
    %59 = arith.addf %55, %58 : vector<64x128xf32>
    %c0_58 = arith.constant 0 : index
    %c0_59 = arith.constant 0 : index
    %60 = vector.load %arg9[%c0_58, %c0_59] : memref<64x128xf32, #tpu.memory_space<vmem>>, vector<64x128xf32>
    tpu.vector_store %arg9[%c0_58, %c0_59], %59 {strides = array<i32>} : memref<64x128xf32, #tpu.memory_space<vmem>>, vector<64x128xf32>,
    %61 = vector.extract_strided_slice %4 {offsets = [0, 38], sizes = [128, 128], strides = [1, 1]} : vector<128x166xbf16> to vector<128x128xbf16>
    %c0_60 = arith.constant 0 : index
    %c0_61 = arith.constant 0 : index
    %62 = vector.load %arg9[%c0_60, %c0_61] : memref<64x128xf32, #tpu.memory_space<vmem>>, vector<64x128xf32>
    %c8 = arith.constant 8 : index
    %c0_62 = arith.constant 0 : index
    %c0_63 = arith.constant 0 : index
    %63 = vector.load %arg4[%c8, %c0_62, %c0_63] : memref<9x64x128xbf16, #tpu.memory_space<vmem>>, vector<1x64x128xbf16>
    %64 = vector.shape_cast %63 : vector<1x64x128xbf16> to vector<64x128xbf16>
    %cst_64 = arith.constant dense<0.000000e+00> : vector<64x128xf32>
    %65 = tpu.matmul %64, %61, %cst_64 {dimension_numbers = #tpu.dot_dimension_numbers<[1], [0], [0], [1], [0, 0, 1, 1], [], []>} : vector<64x128xbf16>, vector<128x128xbf16>, vector<64x128xf32> -> vector<64x128xf32>
    %66 = arith.addf %62, %65 : vector<64x128xf32>
    %c0_65 = arith.constant 0 : index
    %c0_66 = arith.constant 0 : index
    %67 = vector.load %arg9[%c0_65, %c0_66] : memref<64x128xf32, #tpu.memory_space<vmem>>, vector<64x128xf32>
    tpu.vector_store %arg9[%c0_65, %c0_66], %66 {strides = array<i32>} : memref<64x128xf32, #tpu.memory_space<vmem>>, vector<64x128xf32>,
    %c1_i32 = arith.constant 1 : i32
    %68 = arith.cmpi eq, %arg2, %c1_i32 : i32
    %69 = arith.extui %68 : i1 to i32
    %c0_i32_67 = arith.constant 0 : i32
    %70 = arith.cmpi ne, %69, %c0_i32_67 : i32
    scf.if %70 {
      %c0_68 = arith.constant 0 : index
      %c0_69 = arith.constant 0 : index
      %71 = vector.load %arg9[%c0_68, %c0_69] : memref<64x128xf32, #tpu.memory_space<vmem>>, vector<64x128xf32>
      %c0_70 = arith.constant 0 : index
      %c0_71 = arith.constant 0 : index
      %72 = vector.load %arg5[%c0_70, %c0_71] : memref<64x1xf32, #tpu.memory_space<vmem>>, vector<64x1xf32>
      %73 = vector.broadcast %72 : vector<64x1xf32> to vector<64x128xf32>
      %74 = arith.addf %71, %73 : vector<64x128xf32>
      %cst_72 = arith.constant 0.000000e+00 : f32
      %75 = vector.broadcast %cst_72 : f32 to vector<64x128xf32>
      %76 = arith.maximumf %74, %75 : vector<64x128xf32>
      %c0_73 = arith.constant 0 : index
      %c0_74 = arith.constant 0 : index
      %77 = vector.load %arg6[%c0_73, %c0_74] : memref<8x64xbf16, #tpu.memory_space<vmem>>, vector<8x64xbf16>
      %78 = arith.truncf %76 : vector<64x128xf32> to vector<64x128xbf16>
      %cst_75 = arith.constant dense<0.000000e+00> : vector<8x128xf32>
      %79 = tpu.matmul %77, %78, %cst_75 {dimension_numbers = #tpu.dot_dimension_numbers<[1], [0], [0], [1], [0, 0, 1, 1], [], []>} : vector<8x64xbf16>, vector<64x128xbf16>, vector<8x128xf32> -> vector<8x128xf32>
      %c0_76 = arith.constant 0 : index
      %c0_77 = arith.constant 0 : index
      %80 = vector.load %arg7[%c0_76, %c0_77] : memref<8x1xf32, #tpu.memory_space<vmem>>, vector<8x1xf32>
      %81 = vector.broadcast %80 : vector<8x1xf32> to vector<8x128xf32>
      %82 = arith.addf %79, %81 : vector<8x128xf32>
      %c0_78 = arith.constant 0 : index
      %c0_79 = arith.constant 0 : index
      %c0_80 = arith.constant 0 : index
      %83 = vector.load %arg8[%c0_78, %c0_79, %c0_80] : memref<1x8x128xf32, #tpu.memory_space<vmem>>, vector<1x8x128xf32>
      %84 = vector.shape_cast %83 : vector<1x8x128xf32> to vector<8x128xf32>
      %85 = vector.shape_cast %82 : vector<8x128xf32> to vector<1x8x128xf32>
      tpu.vector_store %arg8[%c0_78, %c0_79, %c0_80], %85 {strides = array<i32>} : memref<1x8x128xf32, #tpu.memory_space<vmem>>, vector<1x8x128xf32>,
    } else {
    }
    return
  }
  func.func @transform_0(%arg0: i32, %arg1: i32, %arg2: i32) -> (i32, i32, i32, i32) {
    %c0_i32 = arith.constant 0 : i32
    %c0_i32_0 = arith.constant 0 : i32
    return %arg0, %arg1, %arg2, %c0_i32 : i32, i32, i32, i32
  }
  func.func @transform_1(%arg0: i32, %arg1: i32, %arg2: i32) -> (i32, i32, i32) {
    %c0_i32 = arith.constant 0 : i32
    %c0_i32_0 = arith.constant 0 : i32
    %c0_i32_1 = arith.constant 0 : i32
    return %c0_i32, %c0_i32_0, %arg2 : i32, i32, i32
  }
  func.func @transform_2(%arg0: i32, %arg1: i32, %arg2: i32) -> (i32, i32) {
    %c0_i32 = arith.constant 0 : i32
    %c0_i32_0 = arith.constant 0 : i32
    %c0_i32_1 = arith.constant 0 : i32
    return %c0_i32, %c0_i32_0 : i32, i32
  }
  func.func @transform_3(%arg0: i32, %arg1: i32, %arg2: i32) -> (i32, i32) {
    %c0_i32 = arith.constant 0 : i32
    %c0_i32_0 = arith.constant 0 : i32
    %c0_i32_1 = arith.constant 0 : i32
    return %c0_i32, %c0_i32_0 : i32, i32
  }
  func.func @transform_4(%arg0: i32, %arg1: i32, %arg2: i32) -> (i32, i32) {
    %c0_i32 = arith.constant 0 : i32
    %c0_i32_0 = arith.constant 0 : i32
    %c0_i32_1 = arith.constant 0 : i32
    return %c0_i32, %c0_i32_0 : i32, i32
  }
  func.func @transform_5(%arg0: i32, %arg1: i32, %arg2: i32) -> (i32, i32, i32) {
    %c0_i32 = arith.constant 0 : i32
    %c0_i32_0 = arith.constant 0 : i32
    return %arg0, %c0_i32, %arg1 : i32, i32, i32
  }
}

</mosaic_0001>

<llo_original>
// kernel: tpu_custom_call.1
$region0: #{tpu_custom_call.1}
  #allocation0 [shape = 'u32[]', space=smem, size = 0x4, offset = 0x4, fixed_abs, tag = 'smem constant byte address 0x4 - core index']
  #allocation1 [shape = 'u32[144,128]{1,0:T(1,128)}', space=vmem, size = 0x12000, scoped, tag = 'internal scratch']
  #allocation2 [shape = 'f32[64,128]{1,0:T(8,128)}', space=vmem, size = 0x8000, scoped, tag = 'scratch operand']
  %s0 = inlined_call_operand.vmem [shape: bf16[2,3,256,166], index: 0, kind: input, shape index: {}]
  %s1 = inlined_call_operand.vmem [shape: bf16[9,64,256], index: 1, kind: input, shape index: {}]
  %s2 = inlined_call_operand.vmem [shape: f32[64,1], index: 2, kind: input, shape index: {}]
  %s3 = inlined_call_operand.vmem [shape: bf16[8,64], index: 3, kind: input, shape index: {}]
  %s4 = inlined_call_operand.vmem [shape: f32[8,1], index: 4, kind: input, shape index: {}]
  %s5 = inlined_call_operand.hbm [shape: f32[2,8,384], index: 5, kind: output, shape index: {}]
  %s6 = sld [smem:[#allocation0]]
  $region102: #{tpu_custom_call.1} parent=0
    _
  %s8 = ssub.s32 1, %s6
  %s9 = scalar_select 0, %s8, %s6
  $region1: #{tpu_custom_call.1} parent=0
    #allocation3 [shape = 'u8[294912]{0}', space=vmem, size = 0x48000, scoped, tag = 'input window, operand 1']
    #allocation4 [shape = 'u8[8192]{0}', space=vmem, size = 0x2000, scoped, tag = 'output window, operand 0']
    #allocation5 [shape = 's32[2]{0}', space=sflag, size = 0x8, scoped, tag = 'scoped memory for tpu_custom_call.1']
    %10 = vsyncpa [#allocation5], 0
    %s11 = scalar_lea.sflag [#allocation5], 1
    %12 = vsyncpa %s11, 0
    loop: start=0, step=1, limit=14
    $region2: #{tpu_custom_call.1} parent=1 // loop_pre_header
      _
    $region3: #{tpu_custom_call.1} parent=1 // loop_header
      %s14 = sphi 0, %s18
      %p15 = scmp.ge.s32.totalorder %s14, 14
      %s21 = sphi 0, %s40
      %s22 = sphi 0, %s36
      %s23 = sphi 0, %s32
      %s24 = sphi 0, %s21
      %s25 = sphi 0, %s22
      %s26 = sphi 0, %s23
      %s27 = sphi 0, %s24
      %s28 = sphi 0, %s25
      %s29 = sphi 0, %s26
      %s47 = sphi 0, %s49
      %s50 = sphi 0, %s47
      %s51 = sphi 0, %s50
      %s67 = sphi 0, %s51
      %s73 = sphi 0, %s75
      %s76 = sphi 0, %s73
      %s77 = sphi 0, %s76
      %s93 = sphi 0, %s77
      %s97 = sphi 0, %s97
      %s99 = sphi 0, %s97
      %s100 = sphi 0, %s99
      %s114 = sphi 0, %s100
      %s118 = sphi 0, %s118
      %s120 = sphi 0, %s118
      %s121 = sphi 0, %s120
      %s135 = sphi 0, %s121
      %s139 = sphi 0, %s139
      %s141 = sphi 0, %s139
      %s142 = sphi 0, %s141
      %s156 = sphi 0, %s142
      %s164 = sphi 0, %s166
      %s167 = sphi 0, %s164
      %s168 = sphi 0, %s167
      %s184 = sphi 0, %s168
    $region4: #{tpu_custom_call.1} parent=1 // loop_header_branch
      %17 = sbr.rel (%p15) target = $region8
    $region5: #{tpu_custom_call.1} parent=1 // loop_body
      %s19 = ssub.s32 %s14, 1
      %s20 = ssub.s32 %s14, 2
      %s30 = sadd.s32 1, %s23
      %p31 = scmp.ge.s32.totalorder %s30, 2
      %s32 = scalar_select %p31, 0, %s30
      %s33 = sadd.s32 1, %s22
      %s34 = scalar_select %p31, %s33, %s22
      %p35 = scmp.ge.s32.totalorder %s34, 3
      %s36 = scalar_select %p35, 0, %s34
      %s37 = sadd.s32 1, %s21
      %s38 = scalar_select %p35, %s37, %s21
      %p39 = scmp.ge.s32.totalorder %s38, 2
      %s40 = scalar_select %p39, 0, %s38
      %s41 = ssub.s32 %s21, %s40
      %s42 = ssub.s32 %s22, %s36
      %s43 = sor.u32 %s41, %s42
      %s44 = ssub.s32 %s23, %s32
      %s45 = sor.u32 %s43, %s44
      %p46 = scmp.eq.s32.totalorder %s45, 0
      %s48 = sadd.s32 %s47, 1
      %s49 = scalar_select %p46, %s47, %s48
      %p52 = pneg %p46
      %p53 = scmp.eq.s32.totalorder %s14, 11
      %p54 = por %p52, %p53
      %p55 = scmp.ne.s32.totalorder %s47, %s50
      %p56 = scmp.eq.s32.totalorder %s14, 0
      %p57 = por %p55, %p56
      %p58 = scmp.ne.s32.totalorder %s47, %s50
      %p59 = scmp.eq.s32.totalorder %s19, 11
      %p60 = por %p58, %p59
      %p61 = scmp.ne.s32.totalorder %s50, %s51
      %p62 = scmp.eq.s32.totalorder %s19, 0
      %p63 = por %p61, %p62
      %p64 = scmp.ne.s32.totalorder %s50, %s51
      %p65 = scmp.eq.s32.totalorder %s20, 11
      %p66 = por %p64, %p65
      %p68 = scmp.ne.s32.totalorder %s51, %s67
      %p69 = scmp.eq.s32.totalorder %s20, 0
      %p70 = por %p68, %p69
      %s71 = ssub.s32 %s23, %s32
      %p72 = scmp.eq.s32.totalorder %s71, 0
      %s74 = sadd.s32 %s73, 1
      %s75 = scalar_select %p72, %s73, %s74
      %p78 = pneg %p72
      %p79 = scmp.eq.s32.totalorder %s14, 11
      %p80 = por %p78, %p79
      %p81 = scmp.ne.s32.totalorder %s73, %s76
      %p82 = scmp.eq.s32.totalorder %s14, 0
      %p83 = por %p81, %p82
      %p84 = scmp.ne.s32.totalorder %s73, %s76
      %p85 = scmp.eq.s32.totalorder %s19, 11
      %p86 = por %p84, %p85
      %p87 = scmp.ne.s32.totalorder %s76, %s77
      %p88 = scmp.eq.s32.totalorder %s19, 0
      %p89 = por %p87, %p88
      %p90 = scmp.ne.s32.totalorder %s76, %s77
      %p91 = scmp.eq.s32.totalorder %s20, 11
      %p92 = por %p90, %p91
      %p94 = scmp.ne.s32.totalorder %s77, %s93
      %p95 = scmp.eq.s32.totalorder %s20, 0
      %p96 = por %p94, %p95
      %s98 = sadd.s32 %s97, 1
      %p101 = scmp.eq.s32.totalorder %s14, 11
      %p102 = scmp.ne.s32.totalorder %s97, %s99
      %p103 = scmp.eq.s32.totalorder %s14, 0
      %p104 = por %p102, %p103
      %p105 = scmp.ne.s32.totalorder %s97, %s99
      %p106 = scmp.eq.s32.totalorder %s19, 11
      %p107 = por %p105, %p106
      %p108 = scmp.ne.s32.totalorder %s99, %s100
      %p109 = scmp.eq.s32.totalorder %s19, 0
      %p110 = por %p108, %p109
      %p111 = scmp.ne.s32.totalorder %s99, %s100
      %p112 = scmp.eq.s32.totalorder %s20, 11
      %p113 = por %p111, %p112
      %p115 = scmp.ne.s32.totalorder %s100, %s114
      %p116 = scmp.eq.s32.totalorder %s20, 0
      %p117 = por %p115, %p116
      %s119 = sadd.s32 %s118, 1
      %p122 = scmp.eq.s32.totalorder %s14, 11
      %p123 = scmp.ne.s32.totalorder %s118, %s120
      %p124 = scmp.eq.s32.totalorder %s14, 0
      %p125 = por %p123, %p124
      %p126 = scmp.ne.s32.totalorder %s118, %s120
      %p127 = scmp.eq.s32.totalorder %s19, 11
      %p128 = por %p126, %p127
      %p129 = scmp.ne.s32.totalorder %s120, %s121
      %p130 = scmp.eq.s32.totalorder %s19, 0
      %p131 = por %p129, %p130
      %p132 = scmp.ne.s32.totalorder %s120, %s121
      %p133 = scmp.eq.s32.totalorder %s20, 11
      %p134 = por %p132, %p133
      %p136 = scmp.ne.s32.totalorder %s121, %s135
      %p137 = scmp.eq.s32.totalorder %s20, 0
      %p138 = por %p136, %p137
      %s140 = sadd.s32 %s139, 1
      %p143 = scmp.eq.s32.totalorder %s14, 11
      %p144 = scmp.ne.s32.totalorder %s139, %s141
      %p145 = scmp.eq.s32.totalorder %s14, 0
      %p146 = por %p144, %p145
      %p147 = scmp.ne.s32.totalorder %s139, %s141
      %p148 = scmp.eq.s32.totalorder %s19, 11
      %p149 = por %p147, %p148
      %p150 = scmp.ne.s32.totalorder %s141, %s142
      %p151 = scmp.eq.s32.totalorder %s19, 0
      %p152 = por %p150, %p151
      %p153 = scmp.ne.s32.totalorder %s141, %s142
      %p154 = scmp.eq.s32.totalorder %s20, 11
      %p155 = por %p153, %p154
      %p157 = scmp.ne.s32.totalorder %s142, %s156
      %p158 = scmp.eq.s32.totalorder %s20, 0
      %p159 = por %p157, %p158
      %s160 = ssub.s32 %s21, %s40
      %s161 = ssub.s32 %s22, %s36
      %s162 = sor.u32 %s160, %s161
      %p163 = scmp.eq.s32.totalorder %s162, 0
      %s165 = sadd.s32 %s164, 1
      %s166 = scalar_select %p163, %s164, %s165
      %p169 = pneg %p163
      %p170 = scmp.eq.s32.totalorder %s14, 11
      %p171 = por %p169, %p170
      %p172 = scmp.ne.s32.totalorder %s164, %s167
      %p173 = scmp.eq.s32.totalorder %s14, 0
      %p174 = por %p172, %p173
      %p175 = scmp.ne.s32.totalorder %s164, %s167
      %p176 = scmp.eq.s32.totalorder %s19, 11
      %p177 = por %p175, %p176
      %p178 = scmp.ne.s32.totalorder %s167, %s168
      %p179 = scmp.eq.s32.totalorder %s19, 0
      %p180 = por %p178, %p179
      %p181 = scmp.ne.s32.totalorder %s167, %s168
      %p182 = scmp.eq.s32.totalorder %s20, 11
      %p183 = por %p181, %p182
      %p185 = scmp.ne.s32.totalorder %s168, %s184
      %p186 = scmp.eq.s32.totalorder %s20, 0
      %p187 = por %p185, %p186
      %p188 = scmp.le.s32.totalorder 1, %s14
      %p189 = scmp.lt.s32.totalorder %s14, 13
      %p190 = pnand %p188, %p189
      %p191 = pneg %p190
      // Predicated region
      $region9: #{tpu_custom_call.1} parent=5 // pred_check
        _
      $region10: #{tpu_custom_call.1} parent=5 // pred_check_branch
        %193 = sbr.rel (%p190) target = $region12
      $region11: #{tpu_custom_call.1} parent=5 // pred_region
        %s194 = ssub.s32 %s14, 1
        // Predicated region
        $region13: #{tpu_custom_call.1} parent=11 // pred_check
          %p195 = pneg %p110
        $region14: #{tpu_custom_call.1} parent=11 // pred_check_branch
          %197 = sbr.rel (%p195) target = $region16
        $region15: #{tpu_custom_call.1} parent=11 // pred_region
          _
        $region16: #{tpu_custom_call.1} parent=11 // pred_fallthru
          _
        // Predicated region
        $region17: #{tpu_custom_call.1} parent=11 // pred_check
          %p198 = pneg %p131
        $region18: #{tpu_custom_call.1} parent=11 // pred_check_branch
          %200 = sbr.rel (%p198) target = $region20
        $region19: #{tpu_custom_call.1} parent=11 // pred_region
          _
        $region20: #{tpu_custom_call.1} parent=11 // pred_fallthru
          _
        // Predicated region
        $region21: #{tpu_custom_call.1} parent=11 // pred_check
          %p201 = pneg %p152
        $region22: #{tpu_custom_call.1} parent=11 // pred_check_branch
          %203 = sbr.rel (%p201) target = $region24
        $region23: #{tpu_custom_call.1} parent=11 // pred_region
          _
        $region24: #{tpu_custom_call.1} parent=11 // pred_fallthru
          _
      $region12: #{tpu_custom_call.1} parent=5 // pred_fallthru
        _
      %p204 = scmp.lt.s32.totalorder %s14, 12
      // Predicated region
      $region25: #{tpu_custom_call.1} parent=5 // pred_check
        %p205 = pneg %p204
      $region26: #{tpu_custom_call.1} parent=5 // pred_check_branch
        %207 = sbr.rel (%p205) target = $region28
      $region27: #{tpu_custom_call.1} parent=5 // pred_region
        // Predicated region
        $region29: #{tpu_custom_call.1} parent=27 // pred_check
          %p208 = pneg %p57
        $region30: #{tpu_custom_call.1} parent=27 // pred_check_branch
          %210 = sbr.rel (%p208) target = $region32
        $region31: #{tpu_custom_call.1} parent=27 // pred_region
          %s211 = smul.u32 16, %s23
          %p212 = scmp.lt.s32.totalorder %s21, 1
          %s213 = scalar_select %p212, %s21, 1
          %p214 = scmp.lt.s32.totalorder %s22, 2
          %s215 = scalar_select %p214, %s22, 2
          %p216 = scmp.lt.s32.totalorder %s211, 31
          %s217 = scalar_select %p216, %s211, 31
          %s218 = smul.addr %s217, 2
          %s219 = smul.addr %s215, 64
          %s220 = sadd.s32 %s218, %s219
          %s221 = smul.addr %s213, 192
          %s222 = sadd.s32 %s220, %s221
          %s223 = smul.addr %s222, 4
          %s224 = scalar_lea.vmem %s0, %s223
          %s225 = smul.u32 16, %s23
        $region32: #{tpu_custom_call.1} parent=27 // pred_fallthru
          _
        // Predicated region
        $region33: #{tpu_custom_call.1} parent=27 // pred_check
          %p226 = pneg %p83
        $region34: #{tpu_custom_call.1} parent=27 // pred_check_branch
          %228 = sbr.rel (%p226) target = $region36
        $region35: #{tpu_custom_call.1} parent=27 // pred_region
          %s229 = sand.u32 %s73, 1
          %s230 = sand.u32 %s73, 1
          %s231 = smul.addr %s230, 288
          %s232 = scalar_lea.vmem [#allocation3], %s231
          %s233 = smul.addr %s23, 4
          %s234 = scalar_lea.vmem %s1, %s233
          // Predicated region
          $region37: #{tpu_custom_call.1} parent=35 // pred_check
            _
          $region38: #{tpu_custom_call.1} parent=35 // pred_check_branch
            %236 = sbr.rel (0) target = $region40
          $region39: #{tpu_custom_call.1} parent=35 // pred_region
            // Predicated region
            $region41: #{tpu_custom_call.1} parent=39 // pred_check
              _
            $region42: #{tpu_custom_call.1} parent=39 // pred_check_branch
              %238 = sbr.rel target = $region44
            $region43: #{tpu_custom_call.1} parent=39 // pred_region
              // Predicated region
              $region56: #{tpu_custom_call.1} parent=43 // pred_check
                _
              $region57: #{tpu_custom_call.1} parent=43 // pred_check_branch
                %395 = sbr.rel (0) target = $region59
              $region58: #{tpu_custom_call.1} parent=43 // pred_region
                loop: start=0, step=1, limit=1
                $region60: #{tpu_custom_call.1} parent=58 // loop_pre_header
                  _
                $region61: #{tpu_custom_call.1} parent=58 // loop_header
                  %s397 = sphi 0, %s401
                  %p398 = scmp.ge.s32.totalorder %s397, 1
                  %s402 = sphi %s234, %s234
                  %s403 = sphi %s232, %s232
                $region62: #{tpu_custom_call.1} parent=58 // loop_header_branch
                  %400 = sbr.rel (%p398) target = $region66
                $region63: #{tpu_custom_call.1} parent=58 // loop_body
                  _
                $region64: #{tpu_custom_call.1} parent=58 // loop_footer
                  %s401 = sadd.s32 1, %s397
                $region65: #{tpu_custom_call.1} parent=58 // loop_footer_branch
                  %396 = sbr.rel target = $region61
                $region66: #{tpu_custom_call.1} parent=58 // loop_exit
                  _
                loop: start=0, step=1, limit=1
                $region67: #{tpu_custom_call.1} parent=58 // loop_pre_header
                  _
                $region68: #{tpu_custom_call.1} parent=58 // loop_header
                  %s406 = sphi 0, %s410
                  %p407 = scmp.ge.s32.totalorder %s406, 1
                  %s411 = sphi %s234, %s234
                  %s412 = sphi %s232, %s232
                $region69: #{tpu_custom_call.1} parent=58 // loop_header_branch
                  %409 = sbr.rel (%p407) target = $region73
                $region70: #{tpu_custom_call.1} parent=58 // loop_body
                  %v413 = vld [vmem:[%s411] sm:$0xf]
                  %414 = vst [vmem:[%s412] sm:$0xf] %v413
                  %v415 = vld [vmem:[%s411 + $0x8] sm:$0xf]
                  %416 = vst [vmem:[%s412 + $0x4] sm:$0xf] %v415
                  %v417 = vld [vmem:[%s411 + $0x10] sm:$0xf]
                  %418 = vst [vmem:[%s412 + $0x8] sm:$0xf] %v417
                  %v419 = vld [vmem:[%s411 + $0x18] sm:$0xf]
                  %420 = vst [vmem:[%s412 + $0xc] sm:$0xf] %v419
                  %v421 = vld [vmem:[%s411 + $0x20] sm:$0xf]
                  %422 = vst [vmem:[%s412 + $0x10] sm:$0xf] %v421
                  %v423 = vld [vmem:[%s411 + $0x28] sm:$0xf]
                  %424 = vst [vmem:[%s412 + $0x14] sm:$0xf] %v423
                  %v425 = vld [vmem:[%s411 + $0x30] sm:$0xf]
                  %426 = vst [vmem:[%s412 + $0x18] sm:$0xf] %v425
                  %v427 = vld [vmem:[%s411 + $0x38] sm:$0xf]
                  %428 = vst [vmem:[%s412 + $0x1c] sm:$0xf] %v427
                  %v429 = vld [vmem:[%s411 + $0x40] sm:$0xf]
                  %430 = vst [vmem:[%s412 + $0x20] sm:$0xf] %v429
                  %v431 = vld [vmem:[%s411 + $0x48] sm:$0xf]
                  %432 = vst [vmem:[%s412 + $0x24] sm:$0xf] %v431
                  %v433 = vld [vmem:[%s411 + $0x50] sm:$0xf]
                  %434 = vst [vmem:[%s412 + $0x28] sm:$0xf] %v433
                  %v435 = vld [vmem:[%s411 + $0x58] sm:$0xf]
                  %436 = vst [vmem:[%s412 + $0x2c] sm:$0xf] %v435
                  %v437 = vld [vmem:[%s411 + $0x60] sm:$0xf]
                  %438 = vst [vmem:[%s412 + $0x30] sm:$0xf] %v437
                  %v439 = vld [vmem:[%s411 + $0x68] sm:$0xf]
                  %440 = vst [vmem:[%s412 + $0x34] sm:$0xf] %v439
                  %v441 = vld [vmem:[%s411 + $0x70] sm:$0xf]
                  %442 = vst [vmem:[%s412 + $0x38] sm:$0xf] %v441
                  %v443 = vld [vmem:[%s411 + $0x78] sm:$0xf]
                  %444 = vst [vmem:[%s412 + $0x3c] sm:$0xf] %v443
                  %v445 = vld [vmem:[%s411 + $0x80] sm:$0xf]
                  %446 = vst [vmem:[%s412 + $0x40] sm:$0xf] %v445
                  %v447 = vld [vmem:[%s411 + $0x88] sm:$0xf]
                  %448 = vst [vmem:[%s412 + $0x44] sm:$0xf] %v447
                  %v449 = vld [vmem:[%s411 + $0x90] sm:$0xf]
                  %450 = vst [vmem:[%s412 + $0x48] sm:$0xf] %v449
                  %v451 = vld [vmem:[%s411 + $0x98] sm:$0xf]
                  %452 = vst [vmem:[%s412 + $0x4c] sm:$0xf] %v451
                  %v453 = vld [vmem:[%s411 + $0xa0] sm:$0xf]
                  %454 = vst [vmem:[%s412 + $0x50] sm:$0xf] %v453
                  %v455 = vld [vmem:[%s411 + $0xa8] sm:$0xf]
                  %456 = vst [vmem:[%s412 + $0x54] sm:$0xf] %v455
                  %v457 = vld [vmem:[%s411 + $0xb0] sm:$0xf]
                  %458 = vst [vmem:[%s412 + $0x58] sm:$0xf] %v457
                  %v459 = vld [vmem:[%s411 + $0xb8] sm:$0xf]
                  %460 = vst [vmem:[%s412 + $0x5c] sm:$0xf] %v459
                  %v461 = vld [vmem:[%s411 + $0xc0] sm:$0xf]
                  %462 = vst [vmem:[%s412 + $0x60] sm:$0xf] %v461
                  %v463 = vld [vmem:[%s411 + $0xc8] sm:$0xf]
                  %464 = vst [vmem:[%s412 + $0x64] sm:$0xf] %v463
                  %v465 = vld [vmem:[%s411 + $0xd0] sm:$0xf]
                  %466 = vst [vmem:[%s412 + $0x68] sm:$0xf] %v465
                  %v467 = vld [vmem:[%s411 + $0xd8] sm:$0xf]
                  %468 = vst [vmem:[%s412 + $0x6c] sm:$0xf] %v467
                  %v469 = vld [vmem:[%s411 + $0xe0] sm:$0xf]
                  %470 = vst [vmem:[%s412 + $0x70] sm:$0xf] %v469
                  %v471 = vld [vmem:[%s411 + $0xe8] sm:$0xf]
                  %472 = vst [vmem:[%s412 + $0x74] sm:$0xf] %v471
                  %v473 = vld [vmem:[%s411 + $0xf0] sm:$0xf]
                  %474 = vst [vmem:[%s412 + $0x78] sm:$0xf] %v473
                  %v475 = vld [vmem:[%s411 + $0xf8] sm:$0xf]
                  %476 = vst [vmem:[%s412 + $0x7c] sm:$0xf] %v475
                  %v477 = vld [vmem:[%s411 + $0x100] sm:$0xf]
                  %478 = vst [vmem:[%s412 + $0x80] sm:$0xf] %v477
                  %v479 = vld [vmem:[%s411 + $0x108] sm:$0xf]
                  %480 = vst [vmem:[%s412 + $0x84] sm:$0xf] %v479
                  %v481 = vld [vmem:[%s411 + $0x110] sm:$0xf]
                  %482 = vst [vmem:[%s412 + $0x88] sm:$0xf] %v481
                  %v483 = vld [vmem:[%s411 + $0x118] sm:$0xf]
                  %484 = vst [vmem:[%s412 + $0x8c] sm:$0xf] %v483
                  %v485 = vld [vmem:[%s411 + $0x120] sm:$0xf]
                  %486 = vst [vmem:[%s412 + $0x90] sm:$0xf] %v485
                  %v487 = vld [vmem:[%s411 + $0x128] sm:$0xf]
                  %488 = vst [vmem:[%s412 + $0x94] sm:$0xf] %v487
                  %v489 = vld [vmem:[%s411 + $0x130] sm:$0xf]
                  %490 = vst [vmem:[%s412 + $0x98] sm:$0xf] %v489
                  %v491 = vld [vmem:[%s411 + $0x138] sm:$0xf]
                  %492 = vst [vmem:[%s412 + $0x9c] sm:$0xf] %v491
                  %v493 = vld [vmem:[%s411 + $0x140] sm:$0xf]
                  %494 = vst [vmem:[%s412 + $0xa0] sm:$0xf] %v493
                  %v495 = vld [vmem:[%s411 + $0x148] sm:$0xf]
                  %496 = vst [vmem:[%s412 + $0xa4] sm:$0xf] %v495
                  %v497 = vld [vmem:[%s411 + $0x150] sm:$0xf]
                  %498 = vst [vmem:[%s412 + $0xa8] sm:$0xf] %v497
                  %v499 = vld [vmem:[%s411 + $0x158] sm:$0xf]
                  %500 = vst [vmem:[%s412 + $0xac] sm:$0xf] %v499
                  %v501 = vld [vmem:[%s411 + $0x160] sm:$0xf]
                  %502 = vst [vmem:[%s412 + $0xb0] sm:$0xf] %v501
                  %v503 = vld [vmem:[%s411 + $0x168] sm:$0xf]
                  %504 = vst [vmem:[%s412 + $0xb4] sm:$0xf] %v503
                  %v505 = vld [vmem:[%s411 + $0x170] sm:$0xf]
                  %506 = vst [vmem:[%s412 + $0xb8] sm:$0xf] %v505
                  %v507 = vld [vmem:[%s411 + $0x178] sm:$0xf]
                  %508 = vst [vmem:[%s412 + $0xbc] sm:$0xf] %v507
                  %v509 = vld [vmem:[%s411 + $0x180] sm:$0xf]
                  %510 = vst [vmem:[%s412 + $0xc0] sm:$0xf] %v509
                  %v511 = vld [vmem:[%s411 + $0x188] sm:$0xf]
                  %512 = vst [vmem:[%s412 + $0xc4] sm:$0xf] %v511
                  %v513 = vld [vmem:[%s411 + $0x190] sm:$0xf]
                  %514 = vst [vmem:[%s412 + $0xc8] sm:$0xf] %v513
                  %v515 = vld [vmem:[%s411 + $0x198] sm:$0xf]
                  %516 = vst [vmem:[%s412 + $0xcc] sm:$0xf] %v515
                  %v517 = vld [vmem:[%s411 + $0x1a0] sm:$0xf]
                  %518 = vst [vmem:[%s412 + $0xd0] sm:$0xf] %v517
                  %v519 = vld [vmem:[%s411 + $0x1a8] sm:$0xf]
                  %520 = vst [vmem:[%s412 + $0xd4] sm:$0xf] %v519
                  %v521 = vld [vmem:[%s411 + $0x1b0] sm:$0xf]
                  %522 = vst [vmem:[%s412 + $0xd8] sm:$0xf] %v521
                  %v523 = vld [vmem:[%s411 + $0x1b8] sm:$0xf]
                  %524 = vst [vmem:[%s412 + $0xdc] sm:$0xf] %v523
                  %v525 = vld [vmem:[%s411 + $0x1c0] sm:$0xf]
                  %526 = vst [vmem:[%s412 + $0xe0] sm:$0xf] %v525
                  %v527 = vld [vmem:[%s411 + $0x1c8] sm:$0xf]
                  %528 = vst [vmem:[%s412 + $0xe4] sm:$0xf] %v527
                  %v529 = vld [vmem:[%s411 + $0x1d0] sm:$0xf]
                  %530 = vst [vmem:[%s412 + $0xe8] sm:$0xf] %v529
                  %v531 = vld [vmem:[%s411 + $0x1d8] sm:$0xf]
                  %532 = vst [vmem:[%s412 + $0xec] sm:$0xf] %v531
                  %v533 = vld [vmem:[%s411 + $0x1e0] sm:$0xf]
                  %534 = vst [vmem:[%s412 + $0xf0] sm:$0xf] %v533
                  %v535 = vld [vmem:[%s411 + $0x1e8] sm:$0xf]
                  %536 = vst [vmem:[%s412 + $0xf4] sm:$0xf] %v535
                  %v537 = vld [vmem:[%s411 + $0x1f0] sm:$0xf]
                  %538 = vst [vmem:[%s412 + $0xf8] sm:$0xf] %v537
                  %v539 = vld [vmem:[%s411 + $0x1f8] sm:$0xf]
                  %540 = vst [vmem:[%s412 + $0xfc] sm:$0xf] %v539
                  %v541 = vld [vmem:[%s411 + $0x200] sm:$0xf]
                  %542 = vst [vmem:[%s412 + $0x100] sm:$0xf] %v541
                  %v543 = vld [vmem:[%s411 + $0x208] sm:$0xf]
                  %544 = vst [vmem:[%s412 + $0x104] sm:$0xf] %v543
                  %v545 = vld [vmem:[%s411 + $0x210] sm:$0xf]
                  %546 = vst [vmem:[%s412 + $0x108] sm:$0xf] %v545
                  %v547 = vld [vmem:[%s411 + $0x218] sm:$0xf]
                  %548 = vst [vmem:[%s412 + $0x10c] sm:$0xf] %v547
                  %v549 = vld [vmem:[%s411 + $0x220] sm:$0xf]
                  %550 = vst [vmem:[%s412 + $0x110] sm:$0xf] %v549
                  %v551 = vld [vmem:[%s411 + $0x228] sm:$0xf]
                  %552 = vst [vmem:[%s412 + $0x114] sm:$0xf] %v551
                  %v553 = vld [vmem:[%s411 + $0x230] sm:$0xf]
                  %554 = vst [vmem:[%s412 + $0x118] sm:$0xf] %v553
                  %v555 = vld [vmem:[%s411 + $0x238] sm:$0xf]
                  %556 = vst [vmem:[%s412 + $0x11c] sm:$0xf] %v555
                $region71: #{tpu_custom_call.1} parent=58 // loop_footer
                  %s410 = sadd.s32 1, %s406
                $region72: #{tpu_custom_call.1} parent=58 // loop_footer_branch
                  %405 = sbr.rel target = $region68
                $region73: #{tpu_custom_call.1} parent=58 // loop_exit
                  _
              $region59: #{tpu_custom_call.1} parent=43 // pred_fallthru
                _
            $region44: #{tpu_custom_call.1} parent=39 // pred_fallthru
              _
            // Predicated region
            $region45: #{tpu_custom_call.1} parent=39 // pred_check
              _
            $region46: #{tpu_custom_call.1} parent=39 // pred_check_branch
              %240 = sbr.rel (0) target = $region48
            $region47: #{tpu_custom_call.1} parent=39 // pred_region
              loop: start=0, step=1, limit=1
              $region49: #{tpu_custom_call.1} parent=47 // loop_pre_header
                _
              $region50: #{tpu_custom_call.1} parent=47 // loop_header
                %s243 = sphi 0, %s247
                %p244 = scmp.ge.s32.totalorder %s243, 1
                %s248 = sphi %s234, %s234
                %s249 = sphi %s232, %s232
              $region51: #{tpu_custom_call.1} parent=47 // loop_header_branch
                %246 = sbr.rel (%p244) target = $region55
              $region52: #{tpu_custom_call.1} parent=47 // loop_body
                %v250 = vld [vmem:[%s248] sm:$0xf]
                %251 = vst [vmem:[%s249] sm:$0xf] %v250
                %v252 = vld [vmem:[%s248 + $0x8] sm:$0xf]
                %253 = vst [vmem:[%s249 + $0x4] sm:$0xf] %v252
                %v254 = vld [vmem:[%s248 + $0x10] sm:$0xf]
                %255 = vst [vmem:[%s249 + $0x8] sm:$0xf] %v254
                %v256 = vld [vmem:[%s248 + $0x18] sm:$0xf]
                %257 = vst [vmem:[%s249 + $0xc] sm:$0xf] %v256
                %v258 = vld [vmem:[%s248 + $0x20] sm:$0xf]
                %259 = vst [vmem:[%s249 + $0x10] sm:$0xf] %v258
                %v260 = vld [vmem:[%s248 + $0x28] sm:$0xf]
                %261 = vst [vmem:[%s249 + $0x14] sm:$0xf] %v260
                %v262 = vld [vmem:[%s248 + $0x30] sm:$0xf]
                %263 = vst [vmem:[%s249 + $0x18] sm:$0xf] %v262
                %v264 = vld [vmem:[%s248 + $0x38] sm:$0xf]
                %265 = vst [vmem:[%s249 + $0x1c] sm:$0xf] %v264
                %v266 = vld [vmem:[%s248 + $0x40] sm:$0xf]
                %267 = vst [vmem:[%s249 + $0x20] sm:$0xf] %v266
                %v268 = vld [vmem:[%s248 + $0x48] sm:$0xf]
                %269 = vst [vmem:[%s249 + $0x24] sm:$0xf] %v268
                %v270 = vld [vmem:[%s248 + $0x50] sm:$0xf]
                %271 = vst [vmem:[%s249 + $0x28] sm:$0xf] %v270
                %v272 = vld [vmem:[%s248 + $0x58] sm:$0xf]
                %273 = vst [vmem:[%s249 + $0x2c] sm:$0xf] %v272
                %v274 = vld [vmem:[%s248 + $0x60] sm:$0xf]
                %275 = vst [vmem:[%s249 + $0x30] sm:$0xf] %v274
                %v276 = vld [vmem:[%s248 + $0x68] sm:$0xf]
                %277 = vst [vmem:[%s249 + $0x34] sm:$0xf] %v276
                %v278 = vld [vmem:[%s248 + $0x70] sm:$0xf]
                %279 = vst [vmem:[%s249 + $0x38] sm:$0xf] %v278
                %v280 = vld [vmem:[%s248 + $0x78] sm:$0xf]
                %281 = vst [vmem:[%s249 + $0x3c] sm:$0xf] %v280
                %v282 = vld [vmem:[%s248 + $0x80] sm:$0xf]
                %283 = vst [vmem:[%s249 + $0x40] sm:$0xf] %v282
                %v284 = vld [vmem:[%s248 + $0x88] sm:$0xf]
                %285 = vst [vmem:[%s249 + $0x44] sm:$0xf] %v284
                %v286 = vld [vmem:[%s248 + $0x90] sm:$0xf]
                %287 = vst [vmem:[%s249 + $0x48] sm:$0xf] %v286
                %v288 = vld [vmem:[%s248 + $0x98] sm:$0xf]
                %289 = vst [vmem:[%s249 + $0x4c] sm:$0xf] %v288
                %v290 = vld [vmem:[%s248 + $0xa0] sm:$0xf]
                %291 = vst [vmem:[%s249 + $0x50] sm:$0xf] %v290
                %v292 = vld [vmem:[%s248 + $0xa8] sm:$0xf]
                %293 = vst [vmem:[%s249 + $0x54] sm:$0xf] %v292
                %v294 = vld [vmem:[%s248 + $0xb0] sm:$0xf]
                %295 = vst [vmem:[%s249 + $0x58] sm:$0xf] %v294
                %v296 = vld [vmem:[%s248 + $0xb8] sm:$0xf]
                %297 = vst [vmem:[%s249 + $0x5c] sm:$0xf] %v296
                %v298 = vld [vmem:[%s248 + $0xc0] sm:$0xf]
                %299 = vst [vmem:[%s249 + $0x60] sm:$0xf] %v298
                %v300 = vld [vmem:[%s248 + $0xc8] sm:$0xf]
                %301 = vst [vmem:[%s249 + $0x64] sm:$0xf] %v300
                %v302 = vld [vmem:[%s248 + $0xd0] sm:$0xf]
                %303 = vst [vmem:[%s249 + $0x68] sm:$0xf] %v302
                %v304 = vld [vmem:[%s248 + $0xd8] sm:$0xf]
                %305 = vst [vmem:[%s249 + $0x6c] sm:$0xf] %v304
                %v306 = vld [vmem:[%s248 + $0xe0] sm:$0xf]
                %307 = vst [vmem:[%s249 + $0x70] sm:$0xf] %v306
                %v308 = vld [vmem:[%s248 + $0xe8] sm:$0xf]
                %309 = vst [vmem:[%s249 + $0x74] sm:$0xf] %v308
                %v310 = vld [vmem:[%s248 + $0xf0] sm:$0xf]
                %311 = vst [vmem:[%s249 + $0x78] sm:$0xf] %v310
                %v312 = vld [vmem:[%s248 + $0xf8] sm:$0xf]
                %313 = vst [vmem:[%s249 + $0x7c] sm:$0xf] %v312
                %v314 = vld [vmem:[%s248 + $0x100] sm:$0xf]
                %315 = vst [vmem:[%s249 + $0x80] sm:$0xf] %v314
                %v316 = vld [vmem:[%s248 + $0x108] sm:$0xf]
                %317 = vst [vmem:[%s249 + $0x84] sm:$0xf] %v316
                %v318 = vld [vmem:[%s248 + $0x110] sm:$0xf]
                %319 = vst [vmem:[%s249 + $0x88] sm:$0xf] %v318
                %v320 = vld [vmem:[%s248 + $0x118] sm:$0xf]
                %321 = vst [vmem:[%s249 + $0x8c] sm:$0xf] %v320
                %v322 = vld [vmem:[%s248 + $0x120] sm:$0xf]
                %323 = vst [vmem:[%s249 + $0x90] sm:$0xf] %v322
                %v324 = vld [vmem:[%s248 + $0x128] sm:$0xf]
                %325 = vst [vmem:[%s249 + $0x94] sm:$0xf] %v324
                %v326 = vld [vmem:[%s248 + $0x130] sm:$0xf]
                %327 = vst [vmem:[%s249 + $0x98] sm:$0xf] %v326
                %v328 = vld [vmem:[%s248 + $0x138] sm:$0xf]
                %329 = vst [vmem:[%s249 + $0x9c] sm:$0xf] %v328
                %v330 = vld [vmem:[%s248 + $0x140] sm:$0xf]
                %331 = vst [vmem:[%s249 + $0xa0] sm:$0xf] %v330
                %v332 = vld [vmem:[%s248 + $0x148] sm:$0xf]
                %333 = vst [vmem:[%s249 + $0xa4] sm:$0xf] %v332
                %v334 = vld [vmem:[%s248 + $0x150] sm:$0xf]
                %335 = vst [vmem:[%s249 + $0xa8] sm:$0xf] %v334
                %v336 = vld [vmem:[%s248 + $0x158] sm:$0xf]
                %337 = vst [vmem:[%s249 + $0xac] sm:$0xf] %v336
                %v338 = vld [vmem:[%s248 + $0x160] sm:$0xf]
                %339 = vst [vmem:[%s249 + $0xb0] sm:$0xf] %v338
                %v340 = vld [vmem:[%s248 + $0x168] sm:$0xf]
                %341 = vst [vmem:[%s249 + $0xb4] sm:$0xf] %v340
                %v342 = vld [vmem:[%s248 + $0x170] sm:$0xf]
                %343 = vst [vmem:[%s249 + $0xb8] sm:$0xf] %v342
                %v344 = vld [vmem:[%s248 + $0x178] sm:$0xf]
                %345 = vst [vmem:[%s249 + $0xbc] sm:$0xf] %v344
                %v346 = vld [vmem:[%s248 + $0x180] sm:$0xf]
                %347 = vst [vmem:[%s249 + $0xc0] sm:$0xf] %v346
                %v348 = vld [vmem:[%s248 + $0x188] sm:$0xf]
                %349 = vst [vmem:[%s249 + $0xc4] sm:$0xf] %v348
                %v350 = vld [vmem:[%s248 + $0x190] sm:$0xf]
                %351 = vst [vmem:[%s249 + $0xc8] sm:$0xf] %v350
                %v352 = vld [vmem:[%s248 + $0x198] sm:$0xf]
                %353 = vst [vmem:[%s249 + $0xcc] sm:$0xf] %v352
                %v354 = vld [vmem:[%s248 + $0x1a0] sm:$0xf]
                %355 = vst [vmem:[%s249 + $0xd0] sm:$0xf] %v354
                %v356 = vld [vmem:[%s248 + $0x1a8] sm:$0xf]
                %357 = vst [vmem:[%s249 + $0xd4] sm:$0xf] %v356
                %v358 = vld [vmem:[%s248 + $0x1b0] sm:$0xf]
                %359 = vst [vmem:[%s249 + $0xd8] sm:$0xf] %v358
                %v360 = vld [vmem:[%s248 + $0x1b8] sm:$0xf]
                %361 = vst [vmem:[%s249 + $0xdc] sm:$0xf] %v360
                %v362 = vld [vmem:[%s248 + $0x1c0] sm:$0xf]
                %363 = vst [vmem:[%s249 + $0xe0] sm:$0xf] %v362
                %v364 = vld [vmem:[%s248 + $0x1c8] sm:$0xf]
                %365 = vst [vmem:[%s249 + $0xe4] sm:$0xf] %v364
                %v366 = vld [vmem:[%s248 + $0x1d0] sm:$0xf]
                %367 = vst [vmem:[%s249 + $0xe8] sm:$0xf] %v366
                %v368 = vld [vmem:[%s248 + $0x1d8] sm:$0xf]
                %369 = vst [vmem:[%s249 + $0xec] sm:$0xf] %v368
                %v370 = vld [vmem:[%s248 + $0x1e0] sm:$0xf]
                %371 = vst [vmem:[%s249 + $0xf0] sm:$0xf] %v370
                %v372 = vld [vmem:[%s248 + $0x1e8] sm:$0xf]
                %373 = vst [vmem:[%s249 + $0xf4] sm:$0xf] %v372
                %v374 = vld [vmem:[%s248 + $0x1f0] sm:$0xf]
                %375 = vst [vmem:[%s249 + $0xf8] sm:$0xf] %v374
                %v376 = vld [vmem:[%s248 + $0x1f8] sm:$0xf]
                %377 = vst [vmem:[%s249 + $0xfc] sm:$0xf] %v376
                %v378 = vld [vmem:[%s248 + $0x200] sm:$0xf]
                %379 = vst [vmem:[%s249 + $0x100] sm:$0xf] %v378
                %v380 = vld [vmem:[%s248 + $0x208] sm:$0xf]
                %381 = vst [vmem:[%s249 + $0x104] sm:$0xf] %v380
                %v382 = vld [vmem:[%s248 + $0x210] sm:$0xf]
                %383 = vst [vmem:[%s249 + $0x108] sm:$0xf] %v382
                %v384 = vld [vmem:[%s248 + $0x218] sm:$0xf]
                %385 = vst [vmem:[%s249 + $0x10c] sm:$0xf] %v384
                %v386 = vld [vmem:[%s248 + $0x220] sm:$0xf]
                %387 = vst [vmem:[%s249 + $0x110] sm:$0xf] %v386
                %v388 = vld [vmem:[%s248 + $0x228] sm:$0xf]
                %389 = vst [vmem:[%s249 + $0x114] sm:$0xf] %v388
                %v390 = vld [vmem:[%s248 + $0x230] sm:$0xf]
                %391 = vst [vmem:[%s249 + $0x118] sm:$0xf] %v390
                %v392 = vld [vmem:[%s248 + $0x238] sm:$0xf]
                %393 = vst [vmem:[%s249 + $0x11c] sm:$0xf] %v392
              $region53: #{tpu_custom_call.1} parent=47 // loop_footer
                %s247 = sadd.s32 1, %s243
              $region54: #{tpu_custom_call.1} parent=47 // loop_footer_branch
                %242 = sbr.rel target = $region50
              $region55: #{tpu_custom_call.1} parent=47 // loop_exit
                _
            $region48: #{tpu_custom_call.1} parent=39 // pred_fallthru
              _
          $region40: #{tpu_custom_call.1} parent=35 // pred_fallthru
            _
          %557 = vnop
        $region36: #{tpu_custom_call.1} parent=27 // pred_fallthru
          _
      $region28: #{tpu_custom_call.1} parent=5 // pred_fallthru
        _
      %p558 = scmp.le.s32.totalorder 1, %s14
      %p559 = scmp.lt.s32.totalorder %s14, 13
      %p560 = pnand %p558, %p559
      %p561 = pneg %p560
      // Predicated region
      $region74: #{tpu_custom_call.1} parent=5 // pred_check
        _
      $region75: #{tpu_custom_call.1} parent=5 // pred_check_branch
        %563 = sbr.rel (%p560) target = $region77
      $region76: #{tpu_custom_call.1} parent=5 // pred_region
        %s564 = ssub.s32 %s14, 1
        %s565 = sand.u32 %s76, 1
        %s566 = sand.u32 %s76, 1
        %s567 = smul.addr %s566, 288
        %s568 = scalar_lea.vmem [#allocation3], %s567
        // Predicated region
        $region78: #{tpu_custom_call.1} parent=76 // pred_check
          %p569 = pneg %p89
        $region79: #{tpu_custom_call.1} parent=76 // pred_check_branch
          %571 = sbr.rel (%p569) target = $region81
        $region80: #{tpu_custom_call.1} parent=76 // pred_region
          _
        $region81: #{tpu_custom_call.1} parent=76 // pred_fallthru
          _
        %s572 = smul.u32 16, %s26
        %p573 = scmp.lt.s32.totalorder %s24, 1
        %s574 = scalar_select %p573, %s24, 1
        %p575 = scmp.lt.s32.totalorder %s25, 2
        %s576 = scalar_select %p575, %s25, 2
        %p577 = scmp.lt.s32.totalorder %s572, 31
        %s578 = scalar_select %p577, %s572, 31
        %s579 = smul.addr %s578, 2
        %s580 = smul.addr %s576, 64
        %s581 = sadd.s32 %s579, %s580
        %s582 = smul.addr %s574, 192
        %s583 = sadd.s32 %s581, %s582
        %s584 = smul.addr %s583, 4
        %s585 = scalar_lea.vmem %s0, %s584
        %p586 = pneg %p63
        %p587 = pneg %p60
        %s588 = sand.u32 %s76, 1
        %s589 = sand.u32 %s76, 1
        %s590 = smul.addr %s589, 288
        %s591 = scalar_lea.vmem [#allocation3], %s590
        %p592 = pneg %p89
        %p593 = pneg %p86
        %p594 = pneg %p110
        %p595 = pneg %p107
        %p596 = pneg %p131
        %p597 = pneg %p128
        %p598 = pneg %p152
        %p599 = pneg %p149
        %p600 = pneg %p180
        %p601 = pneg %p177
        %s602 = sand.u32 %s167, 1
        %s603 = scalar_lea.sflag [#allocation5], %s602
        %s604 = sand.u32 %s167, 1
        %s605 = smul.addr %s604, 8
        %s606 = scalar_lea.vmem [#allocation4], %s605
        %s607 = smul.u32 16, %s26
        %p608 = scmp.lt.s32.totalorder %s24, 1
        %s609 = scalar_select %p608, %s24, 1
        %p610 = scmp.lt.s32.totalorder %s25, 2
        %s611 = scalar_select %p610, %s25, 2
        %p612 = scmp.lt.s32.totalorder %s607, 31
        %s613 = scalar_select %p612, %s607, 31
        %s614 = smul.addr %s613, 2
        %s615 = smul.addr %s611, 64
        %s616 = sadd.s32 %s614, %s615
        %s617 = smul.addr %s609, 192
        %s618 = sadd.s32 %s616, %s617
        %s619 = smul.addr %s618, 4
        %s620 = scalar_lea.vmem %s0, %s619
        %s621 = smul.u32 16, %s26
        %p623 = scmp.eq.s32.totalorder %s26, 0
        // Predicated region
        $region82: #{tpu_custom_call.1} parent=76 // pred_check
          %p624 = pneg %p623
        $region83: #{tpu_custom_call.1} parent=76 // pred_check_branch
          %626 = sbr.rel (%p624) target = $region85
        $region84: #{tpu_custom_call.1} parent=76 // pred_region
          %627 = vst [vmem:[#allocation2] sm:$0xff] 0.0
          %628 = vst [vmem:[#allocation2 + $0x8] sm:$0xff] 0.0
          %629 = vst [vmem:[#allocation2 + $0x10] sm:$0xff] 0.0
          %630 = vst [vmem:[#allocation2 + $0x18] sm:$0xff] 0.0
          %631 = vst [vmem:[#allocation2 + $0x20] sm:$0xff] 0.0
          %632 = vst [vmem:[#allocation2 + $0x28] sm:$0xff] 0.0
          %633 = vst [vmem:[#allocation2 + $0x30] sm:$0xff] 0.0
          %634 = vst [vmem:[#allocation2 + $0x38] sm:$0xff] 0.0
        $region85: #{tpu_custom_call.1} parent=76 // pred_fallthru
          _
        %v635 = vld [vmem:[%s620] sm:$0xff]
        %v636 = vld [vmem:[%s620 + $0x8] sm:$0xff]
        %v637 = vld [vmem:[%s620 + $0x10] sm:$0xff]
        %v638 = vld [vmem:[%s620 + $0x18] sm:$0xff]
        %v639 = vld [vmem:[%s620 + $0x20] sm:$0xff]
        %v640 = vld [vmem:[%s620 + $0x28] sm:$0xff]
        %v641 = vld [vmem:[%s620 + $0x30] sm:$0xff]
        %v642 = vld [vmem:[%s620 + $0x38] sm:$0xff]
        %v643 = vld [vmem:[%s620 + $0x40] sm:$0xff]
        %v644 = vld [vmem:[%s620 + $0x48] sm:$0xff]
        %v645 = vld [vmem:[%s620 + $0x50] sm:$0xff]
        %v646 = vld [vmem:[%s620 + $0x58] sm:$0xff]
        %v647 = vld [vmem:[%s620 + $0x60] sm:$0xff]
        %v648 = vld [vmem:[%s620 + $0x68] sm:$0xff]
        %v649 = vld [vmem:[%s620 + $0x70] sm:$0xff]
        %v650 = vld [vmem:[%s620 + $0x78] sm:$0xff]
        %v651 = vld [vmem:[#allocation2] sm:$0xff]
        %v652 = vld [vmem:[#allocation2 + $0x8] sm:$0xff]
        %v653 = vld [vmem:[#allocation2 + $0x10] sm:$0xff]
        %v654 = vld [vmem:[#allocation2 + $0x18] sm:$0xff]
        %v655 = vld [vmem:[#allocation2 + $0x20] sm:$0xff]
        %v656 = vld [vmem:[#allocation2 + $0x28] sm:$0xff]
        %v657 = vld [vmem:[#allocation2 + $0x30] sm:$0xff]
        %v658 = vld [vmem:[#allocation2 + $0x38] sm:$0xff]
        %v659 = vld [vmem:[%s568] sm:$0xf]
        %v660 = vld [vmem:[%s568 + $0x4] sm:$0xf]
        %v661 = vld [vmem:[%s568 + $0x8] sm:$0xf]
        %v662 = vld [vmem:[%s568 + $0xc] sm:$0xf]
        %v663 = vld [vmem:[%s568 + $0x10] sm:$0xf]
        %v664 = vld [vmem:[%s568 + $0x14] sm:$0xf]
        %v665 = vld [vmem:[%s568 + $0x18] sm:$0xf]
        %v666 = vld [vmem:[%s568 + $0x1c] sm:$0xf]
        %v675 = vunpack.c.l.b16 %v659
        %v676 = vunpack.c.l.b16 %v660
        %v677 = vunpack.c.l.b16 %v661
        %v678 = vunpack.c.l.b16 %v662
        %v679 = vunpack.c.l.b16 %v663
        %v680 = vunpack.c.l.b16 %v664
        %v681 = vunpack.c.l.b16 %v665
        %v682 = vunpack.c.l.b16 %v666
        %v683 = vpack.c.b16 %v676, %v675
        %v684 = vpack.c.b16 %v678, %v677
        %v685 = vpack.c.b16 %v680, %v679
        %v686 = vpack.c.b16 %v682, %v681
        %v707 = vunpack.c.l.b16 %v635
        %v708 = vunpack.c.l.b16 %v636
        %v709 = vunpack.c.l.b16 %v637
        %v710 = vunpack.c.l.b16 %v638
        %v711 = vunpack.c.l.b16 %v639
        %v712 = vunpack.c.l.b16 %v640
        %v713 = vunpack.c.l.b16 %v641
        %v714 = vunpack.c.l.b16 %v642
        %v715 = vunpack.c.l.b16 %v643
        %v716 = vunpack.c.l.b16 %v644
        %v717 = vunpack.c.l.b16 %v645
        %v718 = vunpack.c.l.b16 %v646
        %v719 = vunpack.c.l.b16 %v647
        %v720 = vunpack.c.l.b16 %v648
        %v721 = vunpack.c.l.b16 %v649
        %v722 = vunpack.c.l.b16 %v650
        %v723 = vpack.c.b16 %v708, %v707
        %v724 = vpack.c.b16 %v710, %v709
        %v725 = vpack.c.b16 %v712, %v711
        %v726 = vpack.c.b16 %v714, %v713
        %v727 = vpack.c.b16 %v716, %v715
        %v728 = vpack.c.b16 %v718, %v717
        %v729 = vpack.c.b16 %v720, %v719
        %v730 = vpack.c.b16 %v722, %v721
        %739 = vmatprep.subr.bf16.mxu0 0
        %740 = vmatpush1.bf16.msra.mxu0 %v723
        %741 = vmatprep.subr.bf16.mxu0 0
        %742 = vmatpush1.bf16.msra.mxu0 %v724
        %743 = vmatprep.subr.bf16.mxu0 0
        %744 = vmatpush1.bf16.msra.mxu0 %v725
        %745 = vmatprep.subr.bf16.mxu0 0
        %746 = vmatpush1.bf16.msra.mxu0 %v726
        %747 = vmatprep.subr.bf16.mxu0 0
        %748 = vmatpush1.bf16.msra.mxu0 %v727
        %749 = vmatprep.subr.bf16.mxu0 0
        %750 = vmatpush1.bf16.msra.mxu0 %v728
        %751 = vmatprep.subr.bf16.mxu0 0
        %752 = vmatpush1.bf16.msra.mxu0 %v729
        %753 = vmatprep.subr.bf16.mxu0 0
        %754 = vmatpush1.bf16.msra.mxu0 %v730
        %755 = vmatprep.subr.bf16.mxu0 0
        %756 = vmatpush1.bf16.msra.mxu0 0
        %757 = vmatprep.subr.bf16.mxu0 0
        %758 = vmatpush1.bf16.msra.mxu0 0
        %759 = vmatprep.subr.bf16.mxu0 0
        %760 = vmatpush1.bf16.msra.mxu0 0
        %761 = vmatprep.subr.bf16.mxu0 0
        %762 = vmatpush1.bf16.msra.mxu0 0
        %763 = vmatprep.subr.bf16.mxu0 0
        %764 = vmatpush1.bf16.msra.mxu0 0
        %765 = vmatprep.subr.bf16.mxu0 0
        %766 = vmatpush1.bf16.msra.mxu0 0
        %767 = vmatprep.subr.bf16.mxu0 0
        %768 = vmatpush1.bf16.msra.mxu0 0
        %769 = vmatprep.subr.bf16.mxu0 0
        %770 = vmatpush1.bf16.msra.mxu0 0
        %771 = vmatprep.mubr.bf16.mxu0 0
        %772 = vmatmul.mubr.bf16.gmra.mrb[0].mxu0 %v683
        %v773 = vpop.f32.mrb[0].mxu0
        %v774 = vadd.f32 0.0, %v773
        %v775 = vpop.f32.mrb[0].mxu0
        %v776 = vpop.f32.mrb[0].mxu0
        %v777 = vadd.f32 0.0, %v776
        %v778 = vpop.f32.mrb[0].mxu0
        %779 = vmatprep.mubr.bf16.mxu0 0
        %780 = vmatmul.mubr.bf16.gmra.mrb[0].mxu0 %v684
        %v781 = vpop.f32.mrb[0].mxu0
        %v782 = vadd.f32 0.0, %v781
        %v783 = vpop.f32.mrb[0].mxu0
        %v784 = vpop.f32.mrb[0].mxu0
        %v785 = vadd.f32 0.0, %v784
        %v786 = vpop.f32.mrb[0].mxu0
        %787 = vmatprep.mubr.bf16.mxu0 0
        %788 = vmatmul.mubr.bf16.gmra.mrb[0].mxu0 %v685
        %v789 = vpop.f32.mrb[0].mxu0
        %v790 = vadd.f32 0.0, %v789
        %v791 = vpop.f32.mrb[0].mxu0
        %v792 = vpop.f32.mrb[0].mxu0
        %v793 = vadd.f32 0.0, %v792
        %v794 = vpop.f32.mrb[0].mxu0
        %795 = vmatprep.mubr.bf16.mxu0 0
        %796 = vmatmul.mubr.bf16.gmra.mrb[0].mxu0 %v686
        %v797 = vpop.f32.mrb[0].mxu0
        %v798 = vadd.f32 0.0, %v797
        %v799 = vpop.f32.mrb[0].mxu0
        %v800 = vpop.f32.mrb[0].mxu0
        %v801 = vadd.f32 0.0, %v800
        %v802 = vpop.f32.mrb[0].mxu0
        %803 = vdwg.mxu0
        %v804 = vadd.f32 %v651, %v774
        %v805 = vadd.f32 %v652, %v777
        %v806 = vadd.f32 %v653, %v782
        %v807 = vadd.f32 %v654, %v785
        %v808 = vadd.f32 %v655, %v790
        %v809 = vadd.f32 %v656, %v793
        %v810 = vadd.f32 %v657, %v798
        %v811 = vadd.f32 %v658, %v801
        %812 = vst [vmem:[#allocation2] sm:$0xff] %v804
        %813 = vst [vmem:[#allocation2 + $0x8] sm:$0xff] %v805
        %814 = vst [vmem:[#allocation2 + $0x10] sm:$0xff] %v806
        %815 = vst [vmem:[#allocation2 + $0x18] sm:$0xff] %v807
        %816 = vst [vmem:[#allocation2 + $0x20] sm:$0xff] %v808
        %817 = vst [vmem:[#allocation2 + $0x28] sm:$0xff] %v809
        %818 = vst [vmem:[#allocation2 + $0x30] sm:$0xff] %v810
        %819 = vst [vmem:[#allocation2 + $0x38] sm:$0xff] %v811
        %v820 = vld [vmem:[#allocation2] sm:$0xff]
        %v821 = vld [vmem:[#allocation2 + $0x8] sm:$0xff]
        %v822 = vld [vmem:[#allocation2 + $0x10] sm:$0xff]
        %v823 = vld [vmem:[#allocation2 + $0x18] sm:$0xff]
        %v824 = vld [vmem:[#allocation2 + $0x20] sm:$0xff]
        %v825 = vld [vmem:[#allocation2 + $0x28] sm:$0xff]
        %v826 = vld [vmem:[#allocation2 + $0x30] sm:$0xff]
        %v827 = vld [vmem:[#allocation2 + $0x38] sm:$0xff]
        %s828 = scalar_lea.vmem %s568, 32 [#allocation3]
        %v829 = vld [vmem:[%s828] sm:$0xf]
        %v830 = vld [vmem:[%s828 + $0x4] sm:$0xf]
        %v831 = vld [vmem:[%s828 + $0x8] sm:$0xf]
        %v832 = vld [vmem:[%s828 + $0xc] sm:$0xf]
        %v833 = vld [vmem:[%s828 + $0x10] sm:$0xf]
        %v834 = vld [vmem:[%s828 + $0x14] sm:$0xf]
        %v835 = vld [vmem:[%s828 + $0x18] sm:$0xf]
        %v836 = vld [vmem:[%s828 + $0x1c] sm:$0xf]
        %v845 = vunpack.c.l.b16 %v829
        %v846 = vunpack.c.l.b16 %v830
        %v847 = vunpack.c.l.b16 %v831
        %v848 = vunpack.c.l.b16 %v832
        %v849 = vunpack.c.l.b16 %v833
        %v850 = vunpack.c.l.b16 %v834
        %v851 = vunpack.c.l.b16 %v835
        %v852 = vunpack.c.l.b16 %v836
        %v853 = vpack.c.b16 %v846, %v845
        %v854 = vpack.c.b16 %v848, %v847
        %v855 = vpack.c.b16 %v850, %v849
        %v856 = vpack.c.b16 %v852, %v851
        %v861 = vunpack.c.h.b16 %v635
        %v862 = vunpack.c.h.b16 %v636
        %v863 = vunpack.c.h.b16 %v637
        %v864 = vunpack.c.h.b16 %v638
        %v865 = vunpack.c.h.b16 %v639
        %v866 = vunpack.c.h.b16 %v640
        %v867 = vunpack.c.h.b16 %v641
        %v868 = vunpack.c.h.b16 %v642
        %v869 = vunpack.c.h.b16 %v643
        %v870 = vunpack.c.h.b16 %v644
        %v871 = vunpack.c.h.b16 %v645
        %v872 = vunpack.c.h.b16 %v646
        %v873 = vunpack.c.h.b16 %v647
        %v874 = vunpack.c.h.b16 %v648
        %v875 = vunpack.c.h.b16 %v649
        %v876 = vunpack.c.h.b16 %v650
        %v877 = vpack.c.b16 %v862, %v861
        %v878 = vpack.c.b16 %v864, %v863
        %v879 = vpack.c.b16 %v866, %v865
        %v880 = vpack.c.b16 %v868, %v867
        %v881 = vpack.c.b16 %v870, %v869
        %v882 = vpack.c.b16 %v872, %v871
        %v883 = vpack.c.b16 %v874, %v873
        %v884 = vpack.c.b16 %v876, %v875
        %885 = vrot.lane.b32.xlu0 %v723, 127
        %v886 = vpop.permute.xlu0 %885
        %887 = vrot.lane.b32.xlu0 %v877, 127
        %v888 = vpop.permute.xlu0 %887
        %889 = vrot.lane.b32.xlu0 %v724, 127
        %v890 = vpop.permute.xlu0 %889
        %891 = vrot.lane.b32.xlu0 %v878, 127
        %v892 = vpop.permute.xlu0 %891
        %893 = vrot.lane.b32.xlu0 %v725, 127
        %v894 = vpop.permute.xlu0 %893
        %895 = vrot.lane.b32.xlu0 %v879, 127
        %v896 = vpop.permute.xlu0 %895
        %897 = vrot.lane.b32.xlu0 %v726, 127
        %v898 = vpop.permute.xlu0 %897
        %899 = vrot.lane.b32.xlu0 %v880, 127
        %v900 = vpop.permute.xlu0 %899
        %901 = vrot.lane.b32.xlu0 %v727, 127
        %v902 = vpop.permute.xlu0 %901
        %903 = vrot.lane.b32.xlu0 %v881, 127
        %v904 = vpop.permute.xlu0 %903
        %905 = vrot.lane.b32.xlu0 %v728, 127
        %v906 = vpop.permute.xlu0 %905
        %907 = vrot.lane.b32.xlu0 %v882, 127
        %v908 = vpop.permute.xlu0 %907
        %909 = vrot.lane.b32.xlu0 %v729, 127
        %v910 = vpop.permute.xlu0 %909
        %911 = vrot.lane.b32.xlu0 %v883, 127
        %v912 = vpop.permute.xlu0 %911
        %913 = vrot.lane.b32.xlu0 %v730, 127
        %v914 = vpop.permute.xlu0 %913
        %915 = vrot.lane.b32.xlu0 %v884, 127
        %v916 = vpop.permute.xlu0 %915
        %vm917 = vcmask 1039360
        %v918 = vsel %vm917, %v886, %v888
        %v919 = vsel %vm917, %v890, %v892
        %v920 = vsel %vm917, %v894, %v896
        %v921 = vsel %vm917, %v898, %v900
        %v922 = vsel %vm917, %v902, %v904
        %v923 = vsel %vm917, %v906, %v908
        %v924 = vsel %vm917, %v910, %v912
        %v925 = vsel %vm917, %v914, %v916
        %934 = vmatprep.subr.bf16.mxu0 0
        %935 = vmatpush1.bf16.msra.mxu0 %v918
        %936 = vmatprep.subr.bf16.mxu0 0
        %937 = vmatpush1.bf16.msra.mxu0 %v919
        %938 = vmatprep.subr.bf16.mxu0 0
        %939 = vmatpush1.bf16.msra.mxu0 %v920
        %940 = vmatprep.subr.bf16.mxu0 0
        %941 = vmatpush1.bf16.msra.mxu0 %v921
        %942 = vmatprep.subr.bf16.mxu0 0
        %943 = vmatpush1.bf16.msra.mxu0 %v922
        %944 = vmatprep.subr.bf16.mxu0 0
        %945 = vmatpush1.bf16.msra.mxu0 %v923
        %946 = vmatprep.subr.bf16.mxu0 0
        %947 = vmatpush1.bf16.msra.mxu0 %v924
        %948 = vmatprep.subr.bf16.mxu0 0
        %949 = vmatpush1.bf16.msra.mxu0 %v925
        %950 = vmatprep.subr.bf16.mxu0 0
        %951 = vmatpush1.bf16.msra.mxu0 0
        %952 = vmatprep.subr.bf16.mxu0 0
        %953 = vmatpush1.bf16.msra.mxu0 0
        %954 = vmatprep.subr.bf16.mxu0 0
        %955 = vmatpush1.bf16.msra.mxu0 0
        %956 = vmatprep.subr.bf16.mxu0 0
        %957 = vmatpush1.bf16.msra.mxu0 0
        %958 = vmatprep.subr.bf16.mxu0 0
        %959 = vmatpush1.bf16.msra.mxu0 0
        %960 = vmatprep.subr.bf16.mxu0 0
        %961 = vmatpush1.bf16.msra.mxu0 0
        %962 = vmatprep.subr.bf16.mxu0 0
        %963 = vmatpush1.bf16.msra.mxu0 0
        %964 = vmatprep.subr.bf16.mxu0 0
        %965 = vmatpush1.bf16.msra.mxu0 0
        %966 = vmatprep.mubr.bf16.mxu0 0
        %967 = vmatmul.mubr.bf16.gmra.mrb[0].mxu0 %v853
        %v968 = vpop.f32.mrb[0].mxu0
        %v969 = vadd.f32 0.0, %v968
        %v970 = vpop.f32.mrb[0].mxu0
        %v971 = vpop.f32.mrb[0].mxu0
        %v972 = vadd.f32 0.0, %v971
        %v973 = vpop.f32.mrb[0].mxu0
        %974 = vmatprep.mubr.bf16.mxu0 0
        %975 = vmatmul.mubr.bf16.gmra.mrb[0].mxu0 %v854
        %v976 = vpop.f32.mrb[0].mxu0
        %v977 = vadd.f32 0.0, %v976
        %v978 = vpop.f32.mrb[0].mxu0
        %v979 = vpop.f32.mrb[0].mxu0
        %v980 = vadd.f32 0.0, %v979
        %v981 = vpop.f32.mrb[0].mxu0
        %982 = vmatprep.mubr.bf16.mxu0 0
        %983 = vmatmul.mubr.bf16.gmra.mrb[0].mxu0 %v855
        %v984 = vpop.f32.mrb[0].mxu0
        %v985 = vadd.f32 0.0, %v984
        %v986 = vpop.f32.mrb[0].mxu0
        %v987 = vpop.f32.mrb[0].mxu0
        %v988 = vadd.f32 0.0, %v987
        %v989 = vpop.f32.mrb[0].mxu0
        %990 = vmatprep.mubr.bf16.mxu0 0
        %991 = vmatmul.mubr.bf16.gmra.mrb[0].mxu0 %v856
        %v992 = vpop.f32.mrb[0].mxu0
        %v993 = vadd.f32 0.0, %v992
        %v994 = vpop.f32.mrb[0].mxu0
        %v995 = vpop.f32.mrb[0].mxu0
        %v996 = vadd.f32 0.0, %v995
        %v997 = vpop.f32.mrb[0].mxu0
        %998 = vdwg.mxu0
        %v999 = vadd.f32 %v820, %v969
        %v1000 = vadd.f32 %v821, %v972
        %v1001 = vadd.f32 %v822, %v977
        %v1002 = vadd.f32 %v823, %v980
        %v1003 = vadd.f32 %v824, %v985
        %v1004 = vadd.f32 %v825, %v988
        %v1005 = vadd.f32 %v826, %v993
        %v1006 = vadd.f32 %v827, %v996
        %1007 = vst [vmem:[#allocation2] sm:$0xff] %v999
        %1008 = vst [vmem:[#allocation2 + $0x8] sm:$0xff] %v1000
        %1009 = vst [vmem:[#allocation2 + $0x10] sm:$0xff] %v1001
        %1010 = vst [vmem:[#allocation2 + $0x18] sm:$0xff] %v1002
        %1011 = vst [vmem:[#allocation2 + $0x20] sm:$0xff] %v1003
        %1012 = vst [vmem:[#allocation2 + $0x28] sm:$0xff] %v1004
        %1013 = vst [vmem:[#allocation2 + $0x30] sm:$0xff] %v1005
        %1014 = vst [vmem:[#allocation2 + $0x38] sm:$0xff] %v1006
        %v1015 = vld [vmem:[#allocation2] sm:$0xff]
        %v1016 = vld [vmem:[#allocation2 + $0x8] sm:$0xff]
        %v1017 = vld [vmem:[#allocation2 + $0x10] sm:$0xff]
        %v1018 = vld [vmem:[#allocation2 + $0x18] sm:$0xff]
        %v1019 = vld [vmem:[#allocation2 + $0x20] sm:$0xff]
        %v1020 = vld [vmem:[#allocation2 + $0x28] sm:$0xff]
        %v1021 = vld [vmem:[#allocation2 + $0x30] sm:$0xff]
        %v1022 = vld [vmem:[#allocation2 + $0x38] sm:$0xff]
        %s1023 = scalar_lea.vmem %s568, 64 [#allocation3]
        %v1024 = vld [vmem:[%s1023] sm:$0xf]
        %v1025 = vld [vmem:[%s1023 + $0x4] sm:$0xf]
        %v1026 = vld [vmem:[%s1023 + $0x8] sm:$0xf]
        %v1027 = vld [vmem:[%s1023 + $0xc] sm:$0xf]
        %v1028 = vld [vmem:[%s1023 + $0x10] sm:$0xf]
        %v1029 = vld [vmem:[%s1023 + $0x14] sm:$0xf]
        %v1030 = vld [vmem:[%s1023 + $0x18] sm:$0xf]
        %v1031 = vld [vmem:[%s1023 + $0x1c] sm:$0xf]
        %v1040 = vunpack.c.l.b16 %v1024
        %v1041 = vunpack.c.l.b16 %v1025
        %v1042 = vunpack.c.l.b16 %v1026
        %v1043 = vunpack.c.l.b16 %v1027
        %v1044 = vunpack.c.l.b16 %v1028
        %v1045 = vunpack.c.l.b16 %v1029
        %v1046 = vunpack.c.l.b16 %v1030
        %v1047 = vunpack.c.l.b16 %v1031
        %v1048 = vpack.c.b16 %v1041, %v1040
        %v1049 = vpack.c.b16 %v1043, %v1042
        %v1050 = vpack.c.b16 %v1045, %v1044
        %v1051 = vpack.c.b16 %v1047, %v1046
        %1056 = vrot.lane.b32.xlu0 %v723, 126
        %v1057 = vpop.permute.xlu0 %1056
        %1058 = vrot.lane.b32.xlu0 %v877, 126
        %v1059 = vpop.permute.xlu0 %1058
        %1060 = vrot.lane.b32.xlu0 %v724, 126
        %v1061 = vpop.permute.xlu0 %1060
        %1062 = vrot.lane.b32.xlu0 %v878, 126
        %v1063 = vpop.permute.xlu0 %1062
        %1064 = vrot.lane.b32.xlu0 %v725, 126
        %v1065 = vpop.permute.xlu0 %1064
        %1066 = vrot.lane.b32.xlu0 %v879, 126
        %v1067 = vpop.permute.xlu0 %1066
        %1068 = vrot.lane.b32.xlu0 %v726, 126
        %v1069 = vpop.permute.xlu0 %1068
        %1070 = vrot.lane.b32.xlu0 %v880, 126
        %v1071 = vpop.permute.xlu0 %1070
        %1072 = vrot.lane.b32.xlu0 %v727, 126
        %v1073 = vpop.permute.xlu0 %1072
        %1074 = vrot.lane.b32.xlu0 %v881, 126
        %v1075 = vpop.permute.xlu0 %1074
        %1076 = vrot.lane.b32.xlu0 %v728, 126
        %v1077 = vpop.permute.xlu0 %1076
        %1078 = vrot.lane.b32.xlu0 %v882, 126
        %v1079 = vpop.permute.xlu0 %1078
        %1080 = vrot.lane.b32.xlu0 %v729, 126
        %v1081 = vpop.permute.xlu0 %1080
        %1082 = vrot.lane.b32.xlu0 %v883, 126
        %v1083 = vpop.permute.xlu0 %1082
        %1084 = vrot.lane.b32.xlu0 %v730, 126
        %v1085 = vpop.permute.xlu0 %1084
        %1086 = vrot.lane.b32.xlu0 %v884, 126
        %v1087 = vpop.permute.xlu0 %1086
        %vm1088 = vcmask 1031168
        %v1089 = vsel %vm1088, %v1057, %v1059
        %v1090 = vsel %vm1088, %v1061, %v1063
        %v1091 = vsel %vm1088, %v1065, %v1067
        %v1092 = vsel %vm1088, %v1069, %v1071
        %v1093 = vsel %vm1088, %v1073, %v1075
        %v1094 = vsel %vm1088, %v1077, %v1079
        %v1095 = vsel %vm1088, %v1081, %v1083
        %v1096 = vsel %vm1088, %v1085, %v1087
        %1105 = vmatprep.subr.bf16.mxu0 0
        %1106 = vmatpush1.bf16.msra.mxu0 %v1089
        %1107 = vmatprep.subr.bf16.mxu0 0
        %1108 = vmatpush1.bf16.msra.mxu0 %v1090
        %1109 = vmatprep.subr.bf16.mxu0 0
        %1110 = vmatpush1.bf16.msra.mxu0 %v1091
        %1111 = vmatprep.subr.bf16.mxu0 0
        %1112 = vmatpush1.bf16.msra.mxu0 %v1092
        %1113 = vmatprep.subr.bf16.mxu0 0
        %1114 = vmatpush1.bf16.msra.mxu0 %v1093
        %1115 = vmatprep.subr.bf16.mxu0 0
        %1116 = vmatpush1.bf16.msra.mxu0 %v1094
        %1117 = vmatprep.subr.bf16.mxu0 0
        %1118 = vmatpush1.bf16.msra.mxu0 %v1095
        %1119 = vmatprep.subr.bf16.mxu0 0
        %1120 = vmatpush1.bf16.msra.mxu0 %v1096
        %1121 = vmatprep.subr.bf16.mxu0 0
        %1122 = vmatpush1.bf16.msra.mxu0 0
        %1123 = vmatprep.subr.bf16.mxu0 0
        %1124 = vmatpush1.bf16.msra.mxu0 0
        %1125 = vmatprep.subr.bf16.mxu0 0
        %1126 = vmatpush1.bf16.msra.mxu0 0
        %1127 = vmatprep.subr.bf16.mxu0 0
        %1128 = vmatpush1.bf16.msra.mxu0 0
        %1129 = vmatprep.subr.bf16.mxu0 0
        %1130 = vmatpush1.bf16.msra.mxu0 0
        %1131 = vmatprep.subr.bf16.mxu0 0
        %1132 = vmatpush1.bf16.msra.mxu0 0
        %1133 = vmatprep.subr.bf16.mxu0 0
        %1134 = vmatpush1.bf16.msra.mxu0 0
        %1135 = vmatprep.subr.bf16.mxu0 0
        %1136 = vmatpush1.bf16.msra.mxu0 0
        %1137 = vmatprep.mubr.bf16.mxu0 0
        %1138 = vmatmul.mubr.bf16.gmra.mrb[0].mxu0 %v1048
        %v1139 = vpop.f32.mrb[0].mxu0
        %v1140 = vadd.f32 0.0, %v1139
        %v1141 = vpop.f32.mrb[0].mxu0
        %v1142 = vpop.f32.mrb[0].mxu0
        %v1143 = vadd.f32 0.0, %v1142
        %v1144 = vpop.f32.mrb[0].mxu0
        %1145 = vmatprep.mubr.bf16.mxu0 0
        %1146 = vmatmul.mubr.bf16.gmra.mrb[0].mxu0 %v1049
        %v1147 = vpop.f32.mrb[0].mxu0
        %v1148 = vadd.f32 0.0, %v1147
        %v1149 = vpop.f32.mrb[0].mxu0
        %v1150 = vpop.f32.mrb[0].mxu0
        %v1151 = vadd.f32 0.0, %v1150
        %v1152 = vpop.f32.mrb[0].mxu0
        %1153 = vmatprep.mubr.bf16.mxu0 0
        %1154 = vmatmul.mubr.bf16.gmra.mrb[0].mxu0 %v1050
        %v1155 = vpop.f32.mrb[0].mxu0
        %v1156 = vadd.f32 0.0, %v1155
        %v1157 = vpop.f32.mrb[0].mxu0
        %v1158 = vpop.f32.mrb[0].mxu0
        %v1159 = vadd.f32 0.0, %v1158
        %v1160 = vpop.f32.mrb[0].mxu0
        %1161 = vmatprep.mubr.bf16.mxu0 0
        %1162 = vmatmul.mubr.bf16.gmra.mrb[0].mxu0 %v1051
        %v1163 = vpop.f32.mrb[0].mxu0
        %v1164 = vadd.f32 0.0, %v1163
        %v1165 = vpop.f32.mrb[0].mxu0
        %v1166 = vpop.f32.mrb[0].mxu0
        %v1167 = vadd.f32 0.0, %v1166
        %v1168 = vpop.f32.mrb[0].mxu0
        %1169 = vdwg.mxu0
        %v1170 = vadd.f32 %v1015, %v1140
        %v1171 = vadd.f32 %v1016, %v1143
        %v1172 = vadd.f32 %v1017, %v1148
        %v1173 = vadd.f32 %v1018, %v1151
        %v1174 = vadd.f32 %v1019, %v1156
        %v1175 = vadd.f32 %v1020, %v1159
        %v1176 = vadd.f32 %v1021, %v1164
        %v1177 = vadd.f32 %v1022, %v1167
        %1178 = vst [vmem:[#allocation2] sm:$0xff] %v1170
        %1179 = vst [vmem:[#allocation2 + $0x8] sm:$0xff] %v1171
        %1180 = vst [vmem:[#allocation2 + $0x10] sm:$0xff] %v1172
        %1181 = vst [vmem:[#allocation2 + $0x18] sm:$0xff] %v1173
        %1182 = vst [vmem:[#allocation2 + $0x20] sm:$0xff] %v1174
        %1183 = vst [vmem:[#allocation2 + $0x28] sm:$0xff] %v1175
        %1184 = vst [vmem:[#allocation2 + $0x30] sm:$0xff] %v1176
        %1185 = vst [vmem:[#allocation2 + $0x38] sm:$0xff] %v1177
        %v1186 = vld [vmem:[#allocation2] sm:$0xff]
        %v1187 = vld [vmem:[#allocation2 + $0x8] sm:$0xff]
        %v1188 = vld [vmem:[#allocation2 + $0x10] sm:$0xff]
        %v1189 = vld [vmem:[#allocation2 + $0x18] sm:$0xff]
        %v1190 = vld [vmem:[#allocation2 + $0x20] sm:$0xff]
        %v1191 = vld [vmem:[#allocation2 + $0x28] sm:$0xff]
        %v1192 = vld [vmem:[#allocation2 + $0x30] sm:$0xff]
        %v1193 = vld [vmem:[#allocation2 + $0x38] sm:$0xff]
        %s1194 = scalar_lea.vmem %s568, 96 [#allocation3]
        %v1195 = vld [vmem:[%s1194] sm:$0xf]
        %v1196 = vld [vmem:[%s1194 + $0x4] sm:$0xf]
        %v1197 = vld [vmem:[%s1194 + $0x8] sm:$0xf]
        %v1198 = vld [vmem:[%s1194 + $0xc] sm:$0xf]
        %v1199 = vld [vmem:[%s1194 + $0x10] sm:$0xf]
        %v1200 = vld [vmem:[%s1194 + $0x14] sm:$0xf]
        %v1201 = vld [vmem:[%s1194 + $0x18] sm:$0xf]
        %v1202 = vld [vmem:[%s1194 + $0x1c] sm:$0xf]
        %v1211 = vunpack.c.l.b16 %v1195
        %v1212 = vunpack.c.l.b16 %v1196
        %v1213 = vunpack.c.l.b16 %v1197
        %v1214 = vunpack.c.l.b16 %v1198
        %v1215 = vunpack.c.l.b16 %v1199
        %v1216 = vunpack.c.l.b16 %v1200
        %v1217 = vunpack.c.l.b16 %v1201
        %v1218 = vunpack.c.l.b16 %v1202
        %v1219 = vpack.c.b16 %v1212, %v1211
        %v1220 = vpack.c.b16 %v1214, %v1213
        %v1221 = vpack.c.b16 %v1216, %v1215
        %v1222 = vpack.c.b16 %v1218, %v1217
        %1227 = vrot.lane.b32.xlu0 %v723, 110
        %v1228 = vpop.permute.xlu0 %1227
        %1229 = vrot.lane.b32.xlu0 %v877, 110
        %v1230 = vpop.permute.xlu0 %1229
        %1231 = vrot.lane.b32.xlu0 %v724, 110
        %v1232 = vpop.permute.xlu0 %1231
        %1233 = vrot.lane.b32.xlu0 %v878, 110
        %v1234 = vpop.permute.xlu0 %1233
        %1235 = vrot.lane.b32.xlu0 %v725, 110
        %v1236 = vpop.permute.xlu0 %1235
        %1237 = vrot.lane.b32.xlu0 %v879, 110
        %v1238 = vpop.permute.xlu0 %1237
        %1239 = vrot.lane.b32.xlu0 %v726, 110
        %v1240 = vpop.permute.xlu0 %1239
        %1241 = vrot.lane.b32.xlu0 %v880, 110
        %v1242 = vpop.permute.xlu0 %1241
        %1243 = vrot.lane.b32.xlu0 %v727, 110
        %v1244 = vpop.permute.xlu0 %1243
        %1245 = vrot.lane.b32.xlu0 %v881, 110
        %v1246 = vpop.permute.xlu0 %1245
        %1247 = vrot.lane.b32.xlu0 %v728, 110
        %v1248 = vpop.permute.xlu0 %1247
        %1249 = vrot.lane.b32.xlu0 %v882, 110
        %v1250 = vpop.permute.xlu0 %1249
        %1251 = vrot.lane.b32.xlu0 %v729, 110
        %v1252 = vpop.permute.xlu0 %1251
        %1253 = vrot.lane.b32.xlu0 %v883, 110
        %v1254 = vpop.permute.xlu0 %1253
        %1255 = vrot.lane.b32.xlu0 %v730, 110
        %v1256 = vpop.permute.xlu0 %1255
        %1257 = vrot.lane.b32.xlu0 %v884, 110
        %v1258 = vpop.permute.xlu0 %1257
        %vm1259 = vcmask 900096
        %v1260 = vsel %vm1259, %v1228, %v1230
        %v1261 = vsel %vm1259, %v1232, %v1234
        %v1262 = vsel %vm1259, %v1236, %v1238
        %v1263 = vsel %vm1259, %v1240, %v1242
        %v1264 = vsel %vm1259, %v1244, %v1246
        %v1265 = vsel %vm1259, %v1248, %v1250
        %v1266 = vsel %vm1259, %v1252, %v1254
        %v1267 = vsel %vm1259, %v1256, %v1258
        %1276 = vmatprep.subr.bf16.mxu0 0
        %1277 = vmatpush1.bf16.msra.mxu0 %v1260
        %1278 = vmatprep.subr.bf16.mxu0 0
        %1279 = vmatpush1.bf16.msra.mxu0 %v1261
        %1280 = vmatprep.subr.bf16.mxu0 0
        %1281 = vmatpush1.bf16.msra.mxu0 %v1262
        %1282 = vmatprep.subr.bf16.mxu0 0
        %1283 = vmatpush1.bf16.msra.mxu0 %v1263
        %1284 = vmatprep.subr.bf16.mxu0 0
        %1285 = vmatpush1.bf16.msra.mxu0 %v1264
        %1286 = vmatprep.subr.bf16.mxu0 0
        %1287 = vmatpush1.bf16.msra.mxu0 %v1265
        %1288 = vmatprep.subr.bf16.mxu0 0
        %1289 = vmatpush1.bf16.msra.mxu0 %v1266
        %1290 = vmatprep.subr.bf16.mxu0 0
        %1291 = vmatpush1.bf16.msra.mxu0 %v1267
        %1292 = vmatprep.subr.bf16.mxu0 0
        %1293 = vmatpush1.bf16.msra.mxu0 0
        %1294 = vmatprep.subr.bf16.mxu0 0
        %1295 = vmatpush1.bf16.msra.mxu0 0
        %1296 = vmatprep.subr.bf16.mxu0 0
        %1297 = vmatpush1.bf16.msra.mxu0 0
        %1298 = vmatprep.subr.bf16.mxu0 0
        %1299 = vmatpush1.bf16.msra.mxu0 0
        %1300 = vmatprep.subr.bf16.mxu0 0
        %1301 = vmatpush1.bf16.msra.mxu0 0
        %1302 = vmatprep.subr.bf16.mxu0 0
        %1303 = vmatpush1.bf16.msra.mxu0 0
        %1304 = vmatprep.subr.bf16.mxu0 0
        %1305 = vmatpush1.bf16.msra.mxu0 0
        %1306 = vmatprep.subr.bf16.mxu0 0
        %1307 = vmatpush1.bf16.msra.mxu0 0
        %1308 = vmatprep.mubr.bf16.mxu0 0
        %1309 = vmatmul.mubr.bf16.gmra.mrb[0].mxu0 %v1219
        %v1310 = vpop.f32.mrb[0].mxu0
        %v1311 = vadd.f32 0.0, %v1310
        %v1312 = vpop.f32.mrb[0].mxu0
        %v1313 = vpop.f32.mrb[0].mxu0
        %v1314 = vadd.f32 0.0, %v1313
        %v1315 = vpop.f32.mrb[0].mxu0
        %1316 = vmatprep.mubr.bf16.mxu0 0
        %1317 = vmatmul.mubr.bf16.gmra.mrb[0].mxu0 %v1220
        %v1318 = vpop.f32.mrb[0].mxu0
        %v1319 = vadd.f32 0.0, %v1318
        %v1320 = vpop.f32.mrb[0].mxu0
        %v1321 = vpop.f32.mrb[0].mxu0
        %v1322 = vadd.f32 0.0, %v1321
        %v1323 = vpop.f32.mrb[0].mxu0
        %1324 = vmatprep.mubr.bf16.mxu0 0
        %1325 = vmatmul.mubr.bf16.gmra.mrb[0].mxu0 %v1221
        %v1326 = vpop.f32.mrb[0].mxu0
        %v1327 = vadd.f32 0.0, %v1326
        %v1328 = vpop.f32.mrb[0].mxu0
        %v1329 = vpop.f32.mrb[0].mxu0
        %v1330 = vadd.f32 0.0, %v1329
        %v1331 = vpop.f32.mrb[0].mxu0
        %1332 = vmatprep.mubr.bf16.mxu0 0
        %1333 = vmatmul.mubr.bf16.gmra.mrb[0].mxu0 %v1222
        %v1334 = vpop.f32.mrb[0].mxu0
        %v1335 = vadd.f32 0.0, %v1334
        %v1336 = vpop.f32.mrb[0].mxu0
        %v1337 = vpop.f32.mrb[0].mxu0
        %v1338 = vadd.f32 0.0, %v1337
        %v1339 = vpop.f32.mrb[0].mxu0
        %1340 = vdwg.mxu0
        %v1341 = vadd.f32 %v1186, %v1311
        %v1342 = vadd.f32 %v1187, %v1314
        %v1343 = vadd.f32 %v1188, %v1319
        %v1344 = vadd.f32 %v1189, %v1322
        %v1345 = vadd.f32 %v1190, %v1327
        %v1346 = vadd.f32 %v1191, %v1330
        %v1347 = vadd.f32 %v1192, %v1335
        %v1348 = vadd.f32 %v1193, %v1338
        %1349 = vst [vmem:[#allocation2] sm:$0xff] %v1341
        %1350 = vst [vmem:[#allocation2 + $0x8] sm:$0xff] %v1342
        %1351 = vst [vmem:[#allocation2 + $0x10] sm:$0xff] %v1343
        %1352 = vst [vmem:[#allocation2 + $0x18] sm:$0xff] %v1344
        %1353 = vst [vmem:[#allocation2 + $0x20] sm:$0xff] %v1345
        %1354 = vst [vmem:[#allocation2 + $0x28] sm:$0xff] %v1346
        %1355 = vst [vmem:[#allocation2 + $0x30] sm:$0xff] %v1347
        %1356 = vst [vmem:[#allocation2 + $0x38] sm:$0xff] %v1348
        %v1357 = vld [vmem:[#allocation2] sm:$0xff]
        %v1358 = vld [vmem:[#allocation2 + $0x8] sm:$0xff]
        %v1359 = vld [vmem:[#allocation2 + $0x10] sm:$0xff]
        %v1360 = vld [vmem:[#allocation2 + $0x18] sm:$0xff]
        %v1361 = vld [vmem:[#allocation2 + $0x20] sm:$0xff]
        %v1362 = vld [vmem:[#allocation2 + $0x28] sm:$0xff]
        %v1363 = vld [vmem:[#allocation2 + $0x30] sm:$0xff]
        %v1364 = vld [vmem:[#allocation2 + $0x38] sm:$0xff]
        %s1365 = scalar_lea.vmem %s568, 128 [#allocation3]
        %v1366 = vld [vmem:[%s1365] sm:$0xf]
        %v1367 = vld [vmem:[%s1365 + $0x4] sm:$0xf]
        %v1368 = vld [vmem:[%s1365 + $0x8] sm:$0xf]
        %v1369 = vld [vmem:[%s1365 + $0xc] sm:$0xf]
        %v1370 = vld [vmem:[%s1365 + $0x10] sm:$0xf]
        %v1371 = vld [vmem:[%s1365 + $0x14] sm:$0xf]
        %v1372 = vld [vmem:[%s1365 + $0x18] sm:$0xf]
        %v1373 = vld [vmem:[%s1365 + $0x1c] sm:$0xf]
        %v1382 = vunpack.c.l.b16 %v1366
        %v1383 = vunpack.c.l.b16 %v1367
        %v1384 = vunpack.c.l.b16 %v1368
        %v1385 = vunpack.c.l.b16 %v1369
        %v1386 = vunpack.c.l.b16 %v1370
        %v1387 = vunpack.c.l.b16 %v1371
        %v1388 = vunpack.c.l.b16 %v1372
        %v1389 = vunpack.c.l.b16 %v1373
        %v1390 = vpack.c.b16 %v1383, %v1382
        %v1391 = vpack.c.b16 %v1385, %v1384
        %v1392 = vpack.c.b16 %v1387, %v1386
        %v1393 = vpack.c.b16 %v1389, %v1388
        %1398 = vrot.lane.b32.xlu0 %v723, 109
        %v1399 = vpop.permute.xlu0 %1398
        %1400 = vrot.lane.b32.xlu0 %v877, 109
        %v1401 = vpop.permute.xlu0 %1400
        %1402 = vrot.lane.b32.xlu0 %v724, 109
        %v1403 = vpop.permute.xlu0 %1402
        %1404 = vrot.lane.b32.xlu0 %v878, 109
        %v1405 = vpop.permute.xlu0 %1404
        %1406 = vrot.lane.b32.xlu0 %v725, 109
        %v1407 = vpop.permute.xlu0 %1406
        %1408 = vrot.lane.b32.xlu0 %v879, 109
        %v1409 = vpop.permute.xlu0 %1408
        %1410 = vrot.lane.b32.xlu0 %v726, 109
        %v1411 = vpop.permute.xlu0 %1410
        %1412 = vrot.lane.b32.xlu0 %v880, 109
        %v1413 = vpop.permute.xlu0 %1412
        %1414 = vrot.lane.b32.xlu0 %v727, 109
        %v1415 = vpop.permute.xlu0 %1414
        %1416 = vrot.lane.b32.xlu0 %v881, 109
        %v1417 = vpop.permute.xlu0 %1416
        %1418 = vrot.lane.b32.xlu0 %v728, 109
        %v1419 = vpop.permute.xlu0 %1418
        %1420 = vrot.lane.b32.xlu0 %v882, 109
        %v1421 = vpop.permute.xlu0 %1420
        %1422 = vrot.lane.b32.xlu0 %v729, 109
        %v1423 = vpop.permute.xlu0 %1422
        %1424 = vrot.lane.b32.xlu0 %v883, 109
        %v1425 = vpop.permute.xlu0 %1424
        %1426 = vrot.lane.b32.xlu0 %v730, 109
        %v1427 = vpop.permute.xlu0 %1426
        %1428 = vrot.lane.b32.xlu0 %v884, 109
        %v1429 = vpop.permute.xlu0 %1428
        %vm1430 = vcmask 891904
        %v1431 = vsel %vm1430, %v1399, %v1401
        %v1432 = vsel %vm1430, %v1403, %v1405
        %v1433 = vsel %vm1430, %v1407, %v1409
        %v1434 = vsel %vm1430, %v1411, %v1413
        %v1435 = vsel %vm1430, %v1415, %v1417
        %v1436 = vsel %vm1430, %v1419, %v1421
        %v1437 = vsel %vm1430, %v1423, %v1425
        %v1438 = vsel %vm1430, %v1427, %v1429
        %1447 = vmatprep.subr.bf16.mxu0 0
        %1448 = vmatpush1.bf16.msra.mxu0 %v1431
        %1449 = vmatprep.subr.bf16.mxu0 0
        %1450 = vmatpush1.bf16.msra.mxu0 %v1432
        %1451 = vmatprep.subr.bf16.mxu0 0
        %1452 = vmatpush1.bf16.msra.mxu0 %v1433
        %1453 = vmatprep.subr.bf16.mxu0 0
        %1454 = vmatpush1.bf16.msra.mxu0 %v1434
        %1455 = vmatprep.subr.bf16.mxu0 0
        %1456 = vmatpush1.bf16.msra.mxu0 %v1435
        %1457 = vmatprep.subr.bf16.mxu0 0
        %1458 = vmatpush1.bf16.msra.mxu0 %v1436
        %1459 = vmatprep.subr.bf16.mxu0 0
        %1460 = vmatpush1.bf16.msra.mxu0 %v1437
        %1461 = vmatprep.subr.bf16.mxu0 0
        %1462 = vmatpush1.bf16.msra.mxu0 %v1438
        %1463 = vmatprep.subr.bf16.mxu0 0
        %1464 = vmatpush1.bf16.msra.mxu0 0
        %1465 = vmatprep.subr.bf16.mxu0 0
        %1466 = vmatpush1.bf16.msra.mxu0 0
        %1467 = vmatprep.subr.bf16.mxu0 0
        %1468 = vmatpush1.bf16.msra.mxu0 0
        %1469 = vmatprep.subr.bf16.mxu0 0
        %1470 = vmatpush1.bf16.msra.mxu0 0
        %1471 = vmatprep.subr.bf16.mxu0 0
        %1472 = vmatpush1.bf16.msra.mxu0 0
        %1473 = vmatprep.subr.bf16.mxu0 0
        %1474 = vmatpush1.bf16.msra.mxu0 0
        %1475 = vmatprep.subr.bf16.mxu0 0
        %1476 = vmatpush1.bf16.msra.mxu0 0
        %1477 = vmatprep.subr.bf16.mxu0 0
        %1478 = vmatpush1.bf16.msra.mxu0 0
        %1479 = vmatprep.mubr.bf16.mxu0 0
        %1480 = vmatmul.mubr.bf16.gmra.mrb[0].mxu0 %v1390
        %v1481 = vpop.f32.mrb[0].mxu0
        %v1482 = vadd.f32 0.0, %v1481
        %v1483 = vpop.f32.mrb[0].mxu0
        %v1484 = vpop.f32.mrb[0].mxu0
        %v1485 = vadd.f32 0.0, %v1484
        %v1486 = vpop.f32.mrb[0].mxu0
        %1487 = vmatprep.mubr.bf16.mxu0 0
        %1488 = vmatmul.mubr.bf16.gmra.mrb[0].mxu0 %v1391
        %v1489 = vpop.f32.mrb[0].mxu0
        %v1490 = vadd.f32 0.0, %v1489
        %v1491 = vpop.f32.mrb[0].mxu0
        %v1492 = vpop.f32.mrb[0].mxu0
        %v1493 = vadd.f32 0.0, %v1492
        %v1494 = vpop.f32.mrb[0].mxu0
        %1495 = vmatprep.mubr.bf16.mxu0 0
        %1496 = vmatmul.mubr.bf16.gmra.mrb[0].mxu0 %v1392
        %v1497 = vpop.f32.mrb[0].mxu0
        %v1498 = vadd.f32 0.0, %v1497
        %v1499 = vpop.f32.mrb[0].mxu0
        %v1500 = vpop.f32.mrb[0].mxu0
        %v1501 = vadd.f32 0.0, %v1500
        %v1502 = vpop.f32.mrb[0].mxu0
        %1503 = vmatprep.mubr.bf16.mxu0 0
        %1504 = vmatmul.mubr.bf16.gmra.mrb[0].mxu0 %v1393
        %v1505 = vpop.f32.mrb[0].mxu0
        %v1506 = vadd.f32 0.0, %v1505
        %v1507 = vpop.f32.mrb[0].mxu0
        %v1508 = vpop.f32.mrb[0].mxu0
        %v1509 = vadd.f32 0.0, %v1508
        %v1510 = vpop.f32.mrb[0].mxu0
        %1511 = vdwg.mxu0
        %v1512 = vadd.f32 %v1357, %v1482
        %v1513 = vadd.f32 %v1358, %v1485
        %v1514 = vadd.f32 %v1359, %v1490
        %v1515 = vadd.f32 %v1360, %v1493
        %v1516 = vadd.f32 %v1361, %v1498
        %v1517 = vadd.f32 %v1362, %v1501
        %v1518 = vadd.f32 %v1363, %v1506
        %v1519 = vadd.f32 %v1364, %v1509
        %1520 = vst [vmem:[#allocation2] sm:$0xff] %v1512
        %1521 = vst [vmem:[#allocation2 + $0x8] sm:$0xff] %v1513
        %1522 = vst [vmem:[#allocation2 + $0x10] sm:$0xff] %v1514
        %1523 = vst [vmem:[#allocation2 + $0x18] sm:$0xff] %v1515
        %1524 = vst [vmem:[#allocation2 + $0x20] sm:$0xff] %v1516
        %1525 = vst [vmem:[#allocation2 + $0x28] sm:$0xff] %v1517
        %1526 = vst [vmem:[#allocation2 + $0x30] sm:$0xff] %v1518
        %1527 = vst [vmem:[#allocation2 + $0x38] sm:$0xff] %v1519
        %v1528 = vld [vmem:[#allocation2] sm:$0xff]
        %v1529 = vld [vmem:[#allocation2 + $0x8] sm:$0xff]
        %v1530 = vld [vmem:[#allocation2 + $0x10] sm:$0xff]
        %v1531 = vld [vmem:[#allocation2 + $0x18] sm:$0xff]
        %v1532 = vld [vmem:[#allocation2 + $0x20] sm:$0xff]
        %v1533 = vld [vmem:[#allocation2 + $0x28] sm:$0xff]
        %v1534 = vld [vmem:[#allocation2 + $0x30] sm:$0xff]
        %v1535 = vld [vmem:[#allocation2 + $0x38] sm:$0xff]
        %s1536 = scalar_lea.vmem %s568, 160 [#allocation3]
        %v1537 = vld [vmem:[%s1536] sm:$0xf]
        %v1538 = vld [vmem:[%s1536 + $0x4] sm:$0xf]
        %v1539 = vld [vmem:[%s1536 + $0x8] sm:$0xf]
        %v1540 = vld [vmem:[%s1536 + $0xc] sm:$0xf]
        %v1541 = vld [vmem:[%s1536 + $0x10] sm:$0xf]
        %v1542 = vld [vmem:[%s1536 + $0x14] sm:$0xf]
        %v1543 = vld [vmem:[%s1536 + $0x18] sm:$0xf]
        %v1544 = vld [vmem:[%s1536 + $0x1c] sm:$0xf]
        %v1553 = vunpack.c.l.b16 %v1537
        %v1554 = vunpack.c.l.b16 %v1538
        %v1555 = vunpack.c.l.b16 %v1539
        %v1556 = vunpack.c.l.b16 %v1540
        %v1557 = vunpack.c.l.b16 %v1541
        %v1558 = vunpack.c.l.b16 %v1542
        %v1559 = vunpack.c.l.b16 %v1543
        %v1560 = vunpack.c.l.b16 %v1544
        %v1561 = vpack.c.b16 %v1554, %v1553
        %v1562 = vpack.c.b16 %v1556, %v1555
        %v1563 = vpack.c.b16 %v1558, %v1557
        %v1564 = vpack.c.b16 %v1560, %v1559
        %1569 = vrot.lane.b32.xlu0 %v723, 108
        %v1570 = vpop.permute.xlu0 %1569
        %1571 = vrot.lane.b32.xlu0 %v877, 108
        %v1572 = vpop.permute.xlu0 %1571
        %1573 = vrot.lane.b32.xlu0 %v724, 108
        %v1574 = vpop.permute.xlu0 %1573
        %1575 = vrot.lane.b32.xlu0 %v878, 108
        %v1576 = vpop.permute.xlu0 %1575
        %1577 = vrot.lane.b32.xlu0 %v725, 108
        %v1578 = vpop.permute.xlu0 %1577
        %1579 = vrot.lane.b32.xlu0 %v879, 108
        %v1580 = vpop.permute.xlu0 %1579
        %1581 = vrot.lane.b32.xlu0 %v726, 108
        %v1582 = vpop.permute.xlu0 %1581
        %1583 = vrot.lane.b32.xlu0 %v880, 108
        %v1584 = vpop.permute.xlu0 %1583
        %1585 = vrot.lane.b32.xlu0 %v727, 108
        %v1586 = vpop.permute.xlu0 %1585
        %1587 = vrot.lane.b32.xlu0 %v881, 108
        %v1588 = vpop.permute.xlu0 %1587
        %1589 = vrot.lane.b32.xlu0 %v728, 108
        %v1590 = vpop.permute.xlu0 %1589
        %1591 = vrot.lane.b32.xlu0 %v882, 108
        %v1592 = vpop.permute.xlu0 %1591
        %1593 = vrot.lane.b32.xlu0 %v729, 108
        %v1594 = vpop.permute.xlu0 %1593
        %1595 = vrot.lane.b32.xlu0 %v883, 108
        %v1596 = vpop.permute.xlu0 %1595
        %1597 = vrot.lane.b32.xlu0 %v730, 108
        %v1598 = vpop.permute.xlu0 %1597
        %1599 = vrot.lane.b32.xlu0 %v884, 108
        %v1600 = vpop.permute.xlu0 %1599
        %vm1601 = vcmask 883712
        %v1602 = vsel %vm1601, %v1570, %v1572
        %v1603 = vsel %vm1601, %v1574, %v1576
        %v1604 = vsel %vm1601, %v1578, %v1580
        %v1605 = vsel %vm1601, %v1582, %v1584
        %v1606 = vsel %vm1601, %v1586, %v1588
        %v1607 = vsel %vm1601, %v1590, %v1592
        %v1608 = vsel %vm1601, %v1594, %v1596
        %v1609 = vsel %vm1601, %v1598, %v1600
        %1618 = vmatprep.subr.bf16.mxu0 0
        %1619 = vmatpush1.bf16.msra.mxu0 %v1602
        %1620 = vmatprep.subr.bf16.mxu0 0
        %1621 = vmatpush1.bf16.msra.mxu0 %v1603
        %1622 = vmatprep.subr.bf16.mxu0 0
        %1623 = vmatpush1.bf16.msra.mxu0 %v1604
        %1624 = vmatprep.subr.bf16.mxu0 0
        %1625 = vmatpush1.bf16.msra.mxu0 %v1605
        %1626 = vmatprep.subr.bf16.mxu0 0
        %1627 = vmatpush1.bf16.msra.mxu0 %v1606
        %1628 = vmatprep.subr.bf16.mxu0 0
        %1629 = vmatpush1.bf16.msra.mxu0 %v1607
        %1630 = vmatprep.subr.bf16.mxu0 0
        %1631 = vmatpush1.bf16.msra.mxu0 %v1608
        %1632 = vmatprep.subr.bf16.mxu0 0
        %1633 = vmatpush1.bf16.msra.mxu0 %v1609
        %1634 = vmatprep.subr.bf16.mxu0 0
        %1635 = vmatpush1.bf16.msra.mxu0 0
        %1636 = vmatprep.subr.bf16.mxu0 0
        %1637 = vmatpush1.bf16.msra.mxu0 0
        %1638 = vmatprep.subr.bf16.mxu0 0
        %1639 = vmatpush1.bf16.msra.mxu0 0
        %1640 = vmatprep.subr.bf16.mxu0 0
        %1641 = vmatpush1.bf16.msra.mxu0 0
        %1642 = vmatprep.subr.bf16.mxu0 0
        %1643 = vmatpush1.bf16.msra.mxu0 0
        %1644 = vmatprep.subr.bf16.mxu0 0
        %1645 = vmatpush1.bf16.msra.mxu0 0
        %1646 = vmatprep.subr.bf16.mxu0 0
        %1647 = vmatpush1.bf16.msra.mxu0 0
        %1648 = vmatprep.subr.bf16.mxu0 0
        %1649 = vmatpush1.bf16.msra.mxu0 0
        %1650 = vmatprep.mubr.bf16.mxu0 0
        %1651 = vmatmul.mubr.bf16.gmra.mrb[0].mxu0 %v1561
        %v1652 = vpop.f32.mrb[0].mxu0
        %v1653 = vadd.f32 0.0, %v1652
        %v1654 = vpop.f32.mrb[0].mxu0
        %v1655 = vpop.f32.mrb[0].mxu0
        %v1656 = vadd.f32 0.0, %v1655
        %v1657 = vpop.f32.mrb[0].mxu0
        %1658 = vmatprep.mubr.bf16.mxu0 0
        %1659 = vmatmul.mubr.bf16.gmra.mrb[0].mxu0 %v1562
        %v1660 = vpop.f32.mrb[0].mxu0
        %v1661 = vadd.f32 0.0, %v1660
        %v1662 = vpop.f32.mrb[0].mxu0
        %v1663 = vpop.f32.mrb[0].mxu0
        %v1664 = vadd.f32 0.0, %v1663
        %v1665 = vpop.f32.mrb[0].mxu0
        %1666 = vmatprep.mubr.bf16.mxu0 0
        %1667 = vmatmul.mubr.bf16.gmra.mrb[0].mxu0 %v1563
        %v1668 = vpop.f32.mrb[0].mxu0
        %v1669 = vadd.f32 0.0, %v1668
        %v1670 = vpop.f32.mrb[0].mxu0
        %v1671 = vpop.f32.mrb[0].mxu0
        %v1672 = vadd.f32 0.0, %v1671
        %v1673 = vpop.f32.mrb[0].mxu0
        %1674 = vmatprep.mubr.bf16.mxu0 0
        %1675 = vmatmul.mubr.bf16.gmra.mrb[0].mxu0 %v1564
        %v1676 = vpop.f32.mrb[0].mxu0
        %v1677 = vadd.f32 0.0, %v1676
        %v1678 = vpop.f32.mrb[0].mxu0
        %v1679 = vpop.f32.mrb[0].mxu0
        %v1680 = vadd.f32 0.0, %v1679
        %v1681 = vpop.f32.mrb[0].mxu0
        %1682 = vdwg.mxu0
        %v1683 = vadd.f32 %v1528, %v1653
        %v1684 = vadd.f32 %v1529, %v1656
        %v1685 = vadd.f32 %v1530, %v1661
        %v1686 = vadd.f32 %v1531, %v1664
        %v1687 = vadd.f32 %v1532, %v1669
        %v1688 = vadd.f32 %v1533, %v1672
        %v1689 = vadd.f32 %v1534, %v1677
        %v1690 = vadd.f32 %v1535, %v1680
        %1691 = vst [vmem:[#allocation2] sm:$0xff] %v1683
        %1692 = vst [vmem:[#allocation2 + $0x8] sm:$0xff] %v1684
        %1693 = vst [vmem:[#allocation2 + $0x10] sm:$0xff] %v1685
        %1694 = vst [vmem:[#allocation2 + $0x18] sm:$0xff] %v1686
        %1695 = vst [vmem:[#allocation2 + $0x20] sm:$0xff] %v1687
        %1696 = vst [vmem:[#allocation2 + $0x28] sm:$0xff] %v1688
        %1697 = vst [vmem:[#allocation2 + $0x30] sm:$0xff] %v1689
        %1698 = vst [vmem:[#allocation2 + $0x38] sm:$0xff] %v1690
        %v1699 = vld [vmem:[#allocation2] sm:$0xff]
        %v1700 = vld [vmem:[#allocation2 + $0x8] sm:$0xff]
        %v1701 = vld [vmem:[#allocation2 + $0x10] sm:$0xff]
        %v1702 = vld [vmem:[#allocation2 + $0x18] sm:$0xff]
        %v1703 = vld [vmem:[#allocation2 + $0x20] sm:$0xff]
        %v1704 = vld [vmem:[#allocation2 + $0x28] sm:$0xff]
        %v1705 = vld [vmem:[#allocation2 + $0x30] sm:$0xff]
        %v1706 = vld [vmem:[#allocation2 + $0x38] sm:$0xff]
        %s1707 = scalar_lea.vmem %s568, 192 [#allocation3]
        %v1708 = vld [vmem:[%s1707] sm:$0xf]
        %v1709 = vld [vmem:[%s1707 + $0x4] sm:$0xf]
        %v1710 = vld [vmem:[%s1707 + $0x8] sm:$0xf]
        %v1711 = vld [vmem:[%s1707 + $0xc] sm:$0xf]
        %v1712 = vld [vmem:[%s1707 + $0x10] sm:$0xf]
        %v1713 = vld [vmem:[%s1707 + $0x14] sm:$0xf]
        %v1714 = vld [vmem:[%s1707 + $0x18] sm:$0xf]
        %v1715 = vld [vmem:[%s1707 + $0x1c] sm:$0xf]
        %v1724 = vunpack.c.l.b16 %v1708
        %v1725 = vunpack.c.l.b16 %v1709
        %v1726 = vunpack.c.l.b16 %v1710
        %v1727 = vunpack.c.l.b16 %v1711
        %v1728 = vunpack.c.l.b16 %v1712
        %v1729 = vunpack.c.l.b16 %v1713
        %v1730 = vunpack.c.l.b16 %v1714
        %v1731 = vunpack.c.l.b16 %v1715
        %v1732 = vpack.c.b16 %v1725, %v1724
        %v1733 = vpack.c.b16 %v1727, %v1726
        %v1734 = vpack.c.b16 %v1729, %v1728
        %v1735 = vpack.c.b16 %v1731, %v1730
        %1740 = vrot.lane.b32.xlu0 %v723, 92
        %v1741 = vpop.permute.xlu0 %1740
        %1742 = vrot.lane.b32.xlu0 %v877, 92
        %v1743 = vpop.permute.xlu0 %1742
        %1744 = vrot.lane.b32.xlu0 %v724, 92
        %v1745 = vpop.permute.xlu0 %1744
        %1746 = vrot.lane.b32.xlu0 %v878, 92
        %v1747 = vpop.permute.xlu0 %1746
        %1748 = vrot.lane.b32.xlu0 %v725, 92
        %v1749 = vpop.permute.xlu0 %1748
        %1750 = vrot.lane.b32.xlu0 %v879, 92
        %v1751 = vpop.permute.xlu0 %1750
        %1752 = vrot.lane.b32.xlu0 %v726, 92
        %v1753 = vpop.permute.xlu0 %1752
        %1754 = vrot.lane.b32.xlu0 %v880, 92
        %v1755 = vpop.permute.xlu0 %1754
        %1756 = vrot.lane.b32.xlu0 %v727, 92
        %v1757 = vpop.permute.xlu0 %1756
        %1758 = vrot.lane.b32.xlu0 %v881, 92
        %v1759 = vpop.permute.xlu0 %1758
        %1760 = vrot.lane.b32.xlu0 %v728, 92
        %v1761 = vpop.permute.xlu0 %1760
        %1762 = vrot.lane.b32.xlu0 %v882, 92
        %v1763 = vpop.permute.xlu0 %1762
        %1764 = vrot.lane.b32.xlu0 %v729, 92
        %v1765 = vpop.permute.xlu0 %1764
        %1766 = vrot.lane.b32.xlu0 %v883, 92
        %v1767 = vpop.permute.xlu0 %1766
        %1768 = vrot.lane.b32.xlu0 %v730, 92
        %v1769 = vpop.permute.xlu0 %1768
        %1770 = vrot.lane.b32.xlu0 %v884, 92
        %v1771 = vpop.permute.xlu0 %1770
        %vm1772 = vcmask 752640
        %v1773 = vsel %vm1772, %v1741, %v1743
        %v1774 = vsel %vm1772, %v1745, %v1747
        %v1775 = vsel %vm1772, %v1749, %v1751
        %v1776 = vsel %vm1772, %v1753, %v1755
        %v1777 = vsel %vm1772, %v1757, %v1759
        %v1778 = vsel %vm1772, %v1761, %v1763
        %v1779 = vsel %vm1772, %v1765, %v1767
        %v1780 = vsel %vm1772, %v1769, %v1771
        %1789 = vmatprep.subr.bf16.mxu0 0
        %1790 = vmatpush1.bf16.msra.mxu0 %v1773
        %1791 = vmatprep.subr.bf16.mxu0 0
        %1792 = vmatpush1.bf16.msra.mxu0 %v1774
        %1793 = vmatprep.subr.bf16.mxu0 0
        %1794 = vmatpush1.bf16.msra.mxu0 %v1775
        %1795 = vmatprep.subr.bf16.mxu0 0
        %1796 = vmatpush1.bf16.msra.mxu0 %v1776
        %1797 = vmatprep.subr.bf16.mxu0 0
        %1798 = vmatpush1.bf16.msra.mxu0 %v1777
        %1799 = vmatprep.subr.bf16.mxu0 0
        %1800 = vmatpush1.bf16.msra.mxu0 %v1778
        %1801 = vmatprep.subr.bf16.mxu0 0
        %1802 = vmatpush1.bf16.msra.mxu0 %v1779
        %1803 = vmatprep.subr.bf16.mxu0 0
        %1804 = vmatpush1.bf16.msra.mxu0 %v1780
        %1805 = vmatprep.subr.bf16.mxu0 0
        %1806 = vmatpush1.bf16.msra.mxu0 0
        %1807 = vmatprep.subr.bf16.mxu0 0
        %1808 = vmatpush1.bf16.msra.mxu0 0
        %1809 = vmatprep.subr.bf16.mxu0 0
        %1810 = vmatpush1.bf16.msra.mxu0 0
        %1811 = vmatprep.subr.bf16.mxu0 0
        %1812 = vmatpush1.bf16.msra.mxu0 0
        %1813 = vmatprep.subr.bf16.mxu0 0
        %1814 = vmatpush1.bf16.msra.mxu0 0
        %1815 = vmatprep.subr.bf16.mxu0 0
        %1816 = vmatpush1.bf16.msra.mxu0 0
        %1817 = vmatprep.subr.bf16.mxu0 0
        %1818 = vmatpush1.bf16.msra.mxu0 0
        %1819 = vmatprep.subr.bf16.mxu0 0
        %1820 = vmatpush1.bf16.msra.mxu0 0
        %1821 = vmatprep.mubr.bf16.mxu0 0
        %1822 = vmatmul.mubr.bf16.gmra.mrb[0].mxu0 %v1732
        %v1823 = vpop.f32.mrb[0].mxu0
        %v1824 = vadd.f32 0.0, %v1823
        %v1825 = vpop.f32.mrb[0].mxu0
        %v1826 = vpop.f32.mrb[0].mxu0
        %v1827 = vadd.f32 0.0, %v1826
        %v1828 = vpop.f32.mrb[0].mxu0
        %1829 = vmatprep.mubr.bf16.mxu0 0
        %1830 = vmatmul.mubr.bf16.gmra.mrb[0].mxu0 %v1733
        %v1831 = vpop.f32.mrb[0].mxu0
        %v1832 = vadd.f32 0.0, %v1831
        %v1833 = vpop.f32.mrb[0].mxu0
        %v1834 = vpop.f32.mrb[0].mxu0
        %v1835 = vadd.f32 0.0, %v1834
        %v1836 = vpop.f32.mrb[0].mxu0
        %1837 = vmatprep.mubr.bf16.mxu0 0
        %1838 = vmatmul.mubr.bf16.gmra.mrb[0].mxu0 %v1734
        %v1839 = vpop.f32.mrb[0].mxu0
        %v1840 = vadd.f32 0.0, %v1839
        %v1841 = vpop.f32.mrb[0].mxu0
        %v1842 = vpop.f32.mrb[0].mxu0
        %v1843 = vadd.f32 0.0, %v1842
        %v1844 = vpop.f32.mrb[0].mxu0
        %1845 = vmatprep.mubr.bf16.mxu0 0
        %1846 = vmatmul.mubr.bf16.gmra.mrb[0].mxu0 %v1735
        %v1847 = vpop.f32.mrb[0].mxu0
        %v1848 = vadd.f32 0.0, %v1847
        %v1849 = vpop.f32.mrb[0].mxu0
        %v1850 = vpop.f32.mrb[0].mxu0
        %v1851 = vadd.f32 0.0, %v1850
        %v1852 = vpop.f32.mrb[0].mxu0
        %1853 = vdwg.mxu0
        %v1854 = vadd.f32 %v1699, %v1824
        %v1855 = vadd.f32 %v1700, %v1827
        %v1856 = vadd.f32 %v1701, %v1832
        %v1857 = vadd.f32 %v1702, %v1835
        %v1858 = vadd.f32 %v1703, %v1840
        %v1859 = vadd.f32 %v1704, %v1843
        %v1860 = vadd.f32 %v1705, %v1848
        %v1861 = vadd.f32 %v1706, %v1851
        %1862 = vst [vmem:[#allocation2] sm:$0xff] %v1854
        %1863 = vst [vmem:[#allocation2 + $0x8] sm:$0xff] %v1855
        %1864 = vst [vmem:[#allocation2 + $0x10] sm:$0xff] %v1856
        %1865 = vst [vmem:[#allocation2 + $0x18] sm:$0xff] %v1857
        %1866 = vst [vmem:[#allocation2 + $0x20] sm:$0xff] %v1858
        %1867 = vst [vmem:[#allocation2 + $0x28] sm:$0xff] %v1859
        %1868 = vst [vmem:[#allocation2 + $0x30] sm:$0xff] %v1860
        %1869 = vst [vmem:[#allocation2 + $0x38] sm:$0xff] %v1861
        %v1870 = vld [vmem:[#allocation2] sm:$0xff]
        %v1871 = vld [vmem:[#allocation2 + $0x8] sm:$0xff]
        %v1872 = vld [vmem:[#allocation2 + $0x10] sm:$0xff]
        %v1873 = vld [vmem:[#allocation2 + $0x18] sm:$0xff]
        %v1874 = vld [vmem:[#allocation2 + $0x20] sm:$0xff]
        %v1875 = vld [vmem:[#allocation2 + $0x28] sm:$0xff]
        %v1876 = vld [vmem:[#allocation2 + $0x30] sm:$0xff]
        %v1877 = vld [vmem:[#allocation2 + $0x38] sm:$0xff]
        %s1878 = scalar_lea.vmem %s568, 224 [#allocation3]
        %v1879 = vld [vmem:[%s1878] sm:$0xf]
        %v1880 = vld [vmem:[%s1878 + $0x4] sm:$0xf]
        %v1881 = vld [vmem:[%s1878 + $0x8] sm:$0xf]
        %v1882 = vld [vmem:[%s1878 + $0xc] sm:$0xf]
        %v1883 = vld [vmem:[%s1878 + $0x10] sm:$0xf]
        %v1884 = vld [vmem:[%s1878 + $0x14] sm:$0xf]
        %v1885 = vld [vmem:[%s1878 + $0x18] sm:$0xf]
        %v1886 = vld [vmem:[%s1878 + $0x1c] sm:$0xf]
        %v1895 = vunpack.c.l.b16 %v1879
        %v1896 = vunpack.c.l.b16 %v1880
        %v1897 = vunpack.c.l.b16 %v1881
        %v1898 = vunpack.c.l.b16 %v1882
        %v1899 = vunpack.c.l.b16 %v1883
        %v1900 = vunpack.c.l.b16 %v1884
        %v1901 = vunpack.c.l.b16 %v1885
        %v1902 = vunpack.c.l.b16 %v1886
        %v1903 = vpack.c.b16 %v1896, %v1895
        %v1904 = vpack.c.b16 %v1898, %v1897
        %v1905 = vpack.c.b16 %v1900, %v1899
        %v1906 = vpack.c.b16 %v1902, %v1901
        %1911 = vrot.lane.b32.xlu0 %v723, 91
        %v1912 = vpop.permute.xlu0 %1911
        %1913 = vrot.lane.b32.xlu0 %v877, 91
        %v1914 = vpop.permute.xlu0 %1913
        %1915 = vrot.lane.b32.xlu0 %v724, 91
        %v1916 = vpop.permute.xlu0 %1915
        %1917 = vrot.lane.b32.xlu0 %v878, 91
        %v1918 = vpop.permute.xlu0 %1917
        %1919 = vrot.lane.b32.xlu0 %v725, 91
        %v1920 = vpop.permute.xlu0 %1919
        %1921 = vrot.lane.b32.xlu0 %v879, 91
        %v1922 = vpop.permute.xlu0 %1921
        %1923 = vrot.lane.b32.xlu0 %v726, 91
        %v1924 = vpop.permute.xlu0 %1923
        %1925 = vrot.lane.b32.xlu0 %v880, 91
        %v1926 = vpop.permute.xlu0 %1925
        %1927 = vrot.lane.b32.xlu0 %v727, 91
        %v1928 = vpop.permute.xlu0 %1927
        %1929 = vrot.lane.b32.xlu0 %v881, 91
        %v1930 = vpop.permute.xlu0 %1929
        %1931 = vrot.lane.b32.xlu0 %v728, 91
        %v1932 = vpop.permute.xlu0 %1931
        %1933 = vrot.lane.b32.xlu0 %v882, 91
        %v1934 = vpop.permute.xlu0 %1933
        %1935 = vrot.lane.b32.xlu0 %v729, 91
        %v1936 = vpop.permute.xlu0 %1935
        %1937 = vrot.lane.b32.xlu0 %v883, 91
        %v1938 = vpop.permute.xlu0 %1937
        %1939 = vrot.lane.b32.xlu0 %v730, 91
        %v1940 = vpop.permute.xlu0 %1939
        %1941 = vrot.lane.b32.xlu0 %v884, 91
        %v1942 = vpop.permute.xlu0 %1941
        %vm1943 = vcmask 744448
        %v1944 = vsel %vm1943, %v1912, %v1914
        %v1945 = vsel %vm1943, %v1916, %v1918
        %v1946 = vsel %vm1943, %v1920, %v1922
        %v1947 = vsel %vm1943, %v1924, %v1926
        %v1948 = vsel %vm1943, %v1928, %v1930
        %v1949 = vsel %vm1943, %v1932, %v1934
        %v1950 = vsel %vm1943, %v1936, %v1938
        %v1951 = vsel %vm1943, %v1940, %v1942
        %1960 = vmatprep.subr.bf16.mxu0 0
        %1961 = vmatpush1.bf16.msra.mxu0 %v1944
        %1962 = vmatprep.subr.bf16.mxu0 0
        %1963 = vmatpush1.bf16.msra.mxu0 %v1945
        %1964 = vmatprep.subr.bf16.mxu0 0
        %1965 = vmatpush1.bf16.msra.mxu0 %v1946
        %1966 = vmatprep.subr.bf16.mxu0 0
        %1967 = vmatpush1.bf16.msra.mxu0 %v1947
        %1968 = vmatprep.subr.bf16.mxu0 0
        %1969 = vmatpush1.bf16.msra.mxu0 %v1948
        %1970 = vmatprep.subr.bf16.mxu0 0
        %1971 = vmatpush1.bf16.msra.mxu0 %v1949
        %1972 = vmatprep.subr.bf16.mxu0 0
        %1973 = vmatpush1.bf16.msra.mxu0 %v1950
        %1974 = vmatprep.subr.bf16.mxu0 0
        %1975 = vmatpush1.bf16.msra.mxu0 %v1951
        %1976 = vmatprep.subr.bf16.mxu0 0
        %1977 = vmatpush1.bf16.msra.mxu0 0
        %1978 = vmatprep.subr.bf16.mxu0 0
        %1979 = vmatpush1.bf16.msra.mxu0 0
        %1980 = vmatprep.subr.bf16.mxu0 0
        %1981 = vmatpush1.bf16.msra.mxu0 0
        %1982 = vmatprep.subr.bf16.mxu0 0
        %1983 = vmatpush1.bf16.msra.mxu0 0
        %1984 = vmatprep.subr.bf16.mxu0 0
        %1985 = vmatpush1.bf16.msra.mxu0 0
        %1986 = vmatprep.subr.bf16.mxu0 0
        %1987 = vmatpush1.bf16.msra.mxu0 0
        %1988 = vmatprep.subr.bf16.mxu0 0
        %1989 = vmatpush1.bf16.msra.mxu0 0
        %1990 = vmatprep.subr.bf16.mxu0 0
        %1991 = vmatpush1.bf16.msra.mxu0 0
        %1992 = vmatprep.mubr.bf16.mxu0 0
        %1993 = vmatmul.mubr.bf16.gmra.mrb[0].mxu0 %v1903
        %v1994 = vpop.f32.mrb[0].mxu0
        %v1995 = vadd.f32 0.0, %v1994
        %v1996 = vpop.f32.mrb[0].mxu0
        %v1997 = vpop.f32.mrb[0].mxu0
        %v1998 = vadd.f32 0.0, %v1997
        %v1999 = vpop.f32.mrb[0].mxu0
        %2000 = vmatprep.mubr.bf16.mxu0 0
        %2001 = vmatmul.mubr.bf16.gmra.mrb[0].mxu0 %v1904
        %v2002 = vpop.f32.mrb[0].mxu0
        %v2003 = vadd.f32 0.0, %v2002
        %v2004 = vpop.f32.mrb[0].mxu0
        %v2005 = vpop.f32.mrb[0].mxu0
        %v2006 = vadd.f32 0.0, %v2005
        %v2007 = vpop.f32.mrb[0].mxu0
        %2008 = vmatprep.mubr.bf16.mxu0 0
        %2009 = vmatmul.mubr.bf16.gmra.mrb[0].mxu0 %v1905
        %v2010 = vpop.f32.mrb[0].mxu0
        %v2011 = vadd.f32 0.0, %v2010
        %v2012 = vpop.f32.mrb[0].mxu0
        %v2013 = vpop.f32.mrb[0].mxu0
        %v2014 = vadd.f32 0.0, %v2013
        %v2015 = vpop.f32.mrb[0].mxu0
        %2016 = vmatprep.mubr.bf16.mxu0 0
        %2017 = vmatmul.mubr.bf16.gmra.mrb[0].mxu0 %v1906
        %v2018 = vpop.f32.mrb[0].mxu0
        %v2019 = vadd.f32 0.0, %v2018
        %v2020 = vpop.f32.mrb[0].mxu0
        %v2021 = vpop.f32.mrb[0].mxu0
        %v2022 = vadd.f32 0.0, %v2021
        %v2023 = vpop.f32.mrb[0].mxu0
        %2024 = vdwg.mxu0
        %v2025 = vadd.f32 %v1870, %v1995
        %v2026 = vadd.f32 %v1871, %v1998
        %v2027 = vadd.f32 %v1872, %v2003
        %v2028 = vadd.f32 %v1873, %v2006
        %v2029 = vadd.f32 %v1874, %v2011
        %v2030 = vadd.f32 %v1875, %v2014
        %v2031 = vadd.f32 %v1876, %v2019
        %v2032 = vadd.f32 %v1877, %v2022
        %2033 = vst [vmem:[#allocation2] sm:$0xff] %v2025
        %2034 = vst [vmem:[#allocation2 + $0x8] sm:$0xff] %v2026
        %2035 = vst [vmem:[#allocation2 + $0x10] sm:$0xff] %v2027
        %2036 = vst [vmem:[#allocation2 + $0x18] sm:$0xff] %v2028
        %2037 = vst [vmem:[#allocation2 + $0x20] sm:$0xff] %v2029
        %2038 = vst [vmem:[#allocation2 + $0x28] sm:$0xff] %v2030
        %2039 = vst [vmem:[#allocation2 + $0x30] sm:$0xff] %v2031
        %2040 = vst [vmem:[#allocation2 + $0x38] sm:$0xff] %v2032
        %v2041 = vld [vmem:[#allocation2] sm:$0xff]
        %v2042 = vld [vmem:[#allocation2 + $0x8] sm:$0xff]
        %v2043 = vld [vmem:[#allocation2 + $0x10] sm:$0xff]
        %v2044 = vld [vmem:[#allocation2 + $0x18] sm:$0xff]
        %v2045 = vld [vmem:[#allocation2 + $0x20] sm:$0xff]
        %v2046 = vld [vmem:[#allocation2 + $0x28] sm:$0xff]
        %v2047 = vld [vmem:[#allocation2 + $0x30] sm:$0xff]
        %v2048 = vld [vmem:[#allocation2 + $0x38] sm:$0xff]
        %s2049 = scalar_lea.vmem %s568, 256 [#allocation3]
        %v2050 = vld [vmem:[%s2049] sm:$0xf]
        %v2051 = vld [vmem:[%s2049 + $0x4] sm:$0xf]
        %v2052 = vld [vmem:[%s2049 + $0x8] sm:$0xf]
        %v2053 = vld [vmem:[%s2049 + $0xc] sm:$0xf]
        %v2054 = vld [vmem:[%s2049 + $0x10] sm:$0xf]
        %v2055 = vld [vmem:[%s2049 + $0x14] sm:$0xf]
        %v2056 = vld [vmem:[%s2049 + $0x18] sm:$0xf]
        %v2057 = vld [vmem:[%s2049 + $0x1c] sm:$0xf]
        %v2066 = vunpack.c.l.b16 %v2050
        %v2067 = vunpack.c.l.b16 %v2051
        %v2068 = vunpack.c.l.b16 %v2052
        %v2069 = vunpack.c.l.b16 %v2053
        %v2070 = vunpack.c.l.b16 %v2054
        %v2071 = vunpack.c.l.b16 %v2055
        %v2072 = vunpack.c.l.b16 %v2056
        %v2073 = vunpack.c.l.b16 %v2057
        %v2074 = vpack.c.b16 %v2067, %v2066
        %v2075 = vpack.c.b16 %v2069, %v2068
        %v2076 = vpack.c.b16 %v2071, %v2070
        %v2077 = vpack.c.b16 %v2073, %v2072
        %2082 = vrot.lane.b32.xlu0 %v723, 90
        %v2083 = vpop.permute.xlu0 %2082
        %2084 = vrot.lane.b32.xlu0 %v877, 90
        %v2085 = vpop.permute.xlu0 %2084
        %2086 = vrot.lane.b32.xlu0 %v724, 90
        %v2087 = vpop.permute.xlu0 %2086
        %2088 = vrot.lane.b32.xlu0 %v878, 90
        %v2089 = vpop.permute.xlu0 %2088
        %2090 = vrot.lane.b32.xlu0 %v725, 90
        %v2091 = vpop.permute.xlu0 %2090
        %2092 = vrot.lane.b32.xlu0 %v879, 90
        %v2093 = vpop.permute.xlu0 %2092
        %2094 = vrot.lane.b32.xlu0 %v726, 90
        %v2095 = vpop.permute.xlu0 %2094
        %2096 = vrot.lane.b32.xlu0 %v880, 90
        %v2097 = vpop.permute.xlu0 %2096
        %2098 = vrot.lane.b32.xlu0 %v727, 90
        %v2099 = vpop.permute.xlu0 %2098
        %2100 = vrot.lane.b32.xlu0 %v881, 90
        %v2101 = vpop.permute.xlu0 %2100
        %2102 = vrot.lane.b32.xlu0 %v728, 90
        %v2103 = vpop.permute.xlu0 %2102
        %2104 = vrot.lane.b32.xlu0 %v882, 90
        %v2105 = vpop.permute.xlu0 %2104
        %2106 = vrot.lane.b32.xlu0 %v729, 90
        %v2107 = vpop.permute.xlu0 %2106
        %2108 = vrot.lane.b32.xlu0 %v883, 90
        %v2109 = vpop.permute.xlu0 %2108
        %2110 = vrot.lane.b32.xlu0 %v730, 90
        %v2111 = vpop.permute.xlu0 %2110
        %2112 = vrot.lane.b32.xlu0 %v884, 90
        %v2113 = vpop.permute.xlu0 %2112
        %vm2114 = vcmask 736256
        %v2115 = vsel %vm2114, %v2083, %v2085
        %v2116 = vsel %vm2114, %v2087, %v2089
        %v2117 = vsel %vm2114, %v2091, %v2093
        %v2118 = vsel %vm2114, %v2095, %v2097
        %v2119 = vsel %vm2114, %v2099, %v2101
        %v2120 = vsel %vm2114, %v2103, %v2105
        %v2121 = vsel %vm2114, %v2107, %v2109
        %v2122 = vsel %vm2114, %v2111, %v2113
        %2131 = vmatprep.subr.bf16.mxu0 0
        %2132 = vmatpush1.bf16.msra.mxu0 %v2115
        %2133 = vmatprep.subr.bf16.mxu0 0
        %2134 = vmatpush1.bf16.msra.mxu0 %v2116
        %2135 = vmatprep.subr.bf16.mxu0 0
        %2136 = vmatpush1.bf16.msra.mxu0 %v2117
        %2137 = vmatprep.subr.bf16.mxu0 0
        %2138 = vmatpush1.bf16.msra.mxu0 %v2118
        %2139 = vmatprep.subr.bf16.mxu0 0
        %2140 = vmatpush1.bf16.msra.mxu0 %v2119
        %2141 = vmatprep.subr.bf16.mxu0 0
        %2142 = vmatpush1.bf16.msra.mxu0 %v2120
        %2143 = vmatprep.subr.bf16.mxu0 0
        %2144 = vmatpush1.bf16.msra.mxu0 %v2121
        %2145 = vmatprep.subr.bf16.mxu0 0
        %2146 = vmatpush1.bf16.msra.mxu0 %v2122
        %2147 = vmatprep.subr.bf16.mxu0 0
        %2148 = vmatpush1.bf16.msra.mxu0 0
        %2149 = vmatprep.subr.bf16.mxu0 0
        %2150 = vmatpush1.bf16.msra.mxu0 0
        %2151 = vmatprep.subr.bf16.mxu0 0
        %2152 = vmatpush1.bf16.msra.mxu0 0
        %2153 = vmatprep.subr.bf16.mxu0 0
        %2154 = vmatpush1.bf16.msra.mxu0 0
        %2155 = vmatprep.subr.bf16.mxu0 0
        %2156 = vmatpush1.bf16.msra.mxu0 0
        %2157 = vmatprep.subr.bf16.mxu0 0
        %2158 = vmatpush1.bf16.msra.mxu0 0
        %2159 = vmatprep.subr.bf16.mxu0 0
        %2160 = vmatpush1.bf16.msra.mxu0 0
        %2161 = vmatprep.subr.bf16.mxu0 0
        %2162 = vmatpush1.bf16.msra.mxu0 0
        %2163 = vmatprep.mubr.bf16.mxu0 0
        %2164 = vmatmul.mubr.bf16.gmra.mrb[0].mxu0 %v2074
        %v2165 = vpop.f32.mrb[0].mxu0
        %v2166 = vadd.f32 0.0, %v2165
        %v2167 = vpop.f32.mrb[0].mxu0
        %v2168 = vpop.f32.mrb[0].mxu0
        %v2169 = vadd.f32 0.0, %v2168
        %v2170 = vpop.f32.mrb[0].mxu0
        %2171 = vmatprep.mubr.bf16.mxu0 0
        %2172 = vmatmul.mubr.bf16.gmra.mrb[0].mxu0 %v2075
        %v2173 = vpop.f32.mrb[0].mxu0
        %v2174 = vadd.f32 0.0, %v2173
        %v2175 = vpop.f32.mrb[0].mxu0
        %v2176 = vpop.f32.mrb[0].mxu0
        %v2177 = vadd.f32 0.0, %v2176
        %v2178 = vpop.f32.mrb[0].mxu0
        %2179 = vmatprep.mubr.bf16.mxu0 0
        %2180 = vmatmul.mubr.bf16.gmra.mrb[0].mxu0 %v2076
        %v2181 = vpop.f32.mrb[0].mxu0
        %v2182 = vadd.f32 0.0, %v2181
        %v2183 = vpop.f32.mrb[0].mxu0
        %v2184 = vpop.f32.mrb[0].mxu0
        %v2185 = vadd.f32 0.0, %v2184
        %v2186 = vpop.f32.mrb[0].mxu0
        %2187 = vmatprep.mubr.bf16.mxu0 0
        %2188 = vmatmul.mubr.bf16.gmra.mrb[0].mxu0 %v2077
        %v2189 = vpop.f32.mrb[0].mxu0
        %v2190 = vadd.f32 0.0, %v2189
        %v2191 = vpop.f32.mrb[0].mxu0
        %v2192 = vpop.f32.mrb[0].mxu0
        %v2193 = vadd.f32 0.0, %v2192
        %v2194 = vpop.f32.mrb[0].mxu0
        %2195 = vdwg.mxu0
        %v2196 = vadd.f32 %v2041, %v2166
        %v2197 = vadd.f32 %v2042, %v2169
        %v2198 = vadd.f32 %v2043, %v2174
        %v2199 = vadd.f32 %v2044, %v2177
        %v2200 = vadd.f32 %v2045, %v2182
        %v2201 = vadd.f32 %v2046, %v2185
        %v2202 = vadd.f32 %v2047, %v2190
        %v2203 = vadd.f32 %v2048, %v2193
        %2204 = vst [vmem:[#allocation2] sm:$0xff] %v2196
        %2205 = vst [vmem:[#allocation2 + $0x8] sm:$0xff] %v2197
        %2206 = vst [vmem:[#allocation2 + $0x10] sm:$0xff] %v2198
        %2207 = vst [vmem:[#allocation2 + $0x18] sm:$0xff] %v2199
        %2208 = vst [vmem:[#allocation2 + $0x20] sm:$0xff] %v2200
        %2209 = vst [vmem:[#allocation2 + $0x28] sm:$0xff] %v2201
        %2210 = vst [vmem:[#allocation2 + $0x30] sm:$0xff] %v2202
        %2211 = vst [vmem:[#allocation2 + $0x38] sm:$0xff] %v2203
        %p2212 = scmp.eq.s32.totalorder %s26, 1
        // Predicated region
        $region86: #{tpu_custom_call.1} parent=76 // pred_check
          %p2213 = pneg %p2212
        $region87: #{tpu_custom_call.1} parent=76 // pred_check_branch
          %2215 = sbr.rel (%p2213) target = $region89
        $region88: #{tpu_custom_call.1} parent=76 // pred_region
          %v2216 = vld [vmem:[#allocation2] sm:$0xff]
          %v2217 = vld [vmem:[#allocation2 + $0x8] sm:$0xff]
          %v2218 = vld [vmem:[#allocation2 + $0x10] sm:$0xff]
          %v2219 = vld [vmem:[#allocation2 + $0x18] sm:$0xff]
          %v2220 = vld [vmem:[#allocation2 + $0x20] sm:$0xff]
          %v2221 = vld [vmem:[#allocation2 + $0x28] sm:$0xff]
          %v2222 = vld [vmem:[#allocation2 + $0x30] sm:$0xff]
          %v2223 = vld [vmem:[#allocation2 + $0x38] sm:$0xff]
          %v2224 = vld [vmem:[%s2] sm:$0xff]
          %v2225 = vld [vmem:[%s2 + $0x8] sm:$0xff]
          %v2226 = vld [vmem:[%s2 + $0x10] sm:$0xff]
          %v2227 = vld [vmem:[%s2 + $0x18] sm:$0xff]
          %v2228 = vld [vmem:[%s2 + $0x20] sm:$0xff]
          %v2229 = vld [vmem:[%s2 + $0x28] sm:$0xff]
          %v2230 = vld [vmem:[%s2 + $0x30] sm:$0xff]
          %v2231 = vld [vmem:[%s2 + $0x38] sm:$0xff]
          %2233 = vset.pattern.permute.xlu0 0
          %2234 = vperm.xlu0 %2233, %v2224
          %v2235 = vpop.permute.xlu0 %2234
          %2238 = vset.pattern.permute.xlu0 0
          %2239 = vperm.xlu0 %2238, %v2225
          %v2240 = vpop.permute.xlu0 %2239
          %2243 = vset.pattern.permute.xlu0 0
          %2244 = vperm.xlu0 %2243, %v2226
          %v2245 = vpop.permute.xlu0 %2244
          %2248 = vset.pattern.permute.xlu0 0
          %2249 = vperm.xlu0 %2248, %v2227
          %v2250 = vpop.permute.xlu0 %2249
          %2253 = vset.pattern.permute.xlu0 0
          %2254 = vperm.xlu0 %2253, %v2228
          %v2255 = vpop.permute.xlu0 %2254
          %2258 = vset.pattern.permute.xlu0 0
          %2259 = vperm.xlu0 %2258, %v2229
          %v2260 = vpop.permute.xlu0 %2259
          %2263 = vset.pattern.permute.xlu0 0
          %2264 = vperm.xlu0 %2263, %v2230
          %v2265 = vpop.permute.xlu0 %2264
          %2268 = vset.pattern.permute.xlu0 0
          %2269 = vperm.xlu0 %2268, %v2231
          %v2270 = vpop.permute.xlu0 %2269
          %v2272 = vadd.f32 %v2216, %v2235
          %v2273 = vadd.f32 %v2217, %v2240
          %v2274 = vadd.f32 %v2218, %v2245
          %v2275 = vadd.f32 %v2219, %v2250
          %v2276 = vadd.f32 %v2220, %v2255
          %v2277 = vadd.f32 %v2221, %v2260
          %v2278 = vadd.f32 %v2222, %v2265
          %v2279 = vadd.f32 %v2223, %v2270
          %v2280 = vmax.f32 %v2272, 0.0
          %v2281 = vmax.f32 %v2273, 0.0
          %v2282 = vmax.f32 %v2274, 0.0
          %v2283 = vmax.f32 %v2275, 0.0
          %v2284 = vmax.f32 %v2276, 0.0
          %v2285 = vmax.f32 %v2277, 0.0
          %v2286 = vmax.f32 %v2278, 0.0
          %v2287 = vmax.f32 %v2279, 0.0
          %v2288 = vld [vmem:[%s3] sm:$0xf]
          %v2289 = vpack.c.bf16 %v2281, %v2280
          %v2290 = vpack.c.bf16 %v2283, %v2282
          %v2291 = vpack.c.bf16 %v2285, %v2284
          %v2292 = vpack.c.bf16 %v2287, %v2286
          %v2293 = vld [vmem:[%s4] sm:$0xff]
          %2295 = vset.pattern.permute.xlu0 0
          %2296 = vperm.xlu0 %2295, %v2293
          %v2297 = vpop.permute.xlu0 %2296
          %vm2299 = vcmask 523264
          %v2301 = vsel %vm2299, %v2288, 0
          %2303 = vmatprep.subr.bf16.mxu0 0
          %2304 = vmatpush1.bf16.msra.mxu0 %v2289
          %2305 = vmatprep.subr.bf16.mxu0 0
          %2306 = vmatpush1.bf16.msra.mxu0 %v2290
          %2307 = vmatprep.subr.bf16.mxu0 0
          %2308 = vmatpush1.bf16.msra.mxu0 %v2291
          %2309 = vmatprep.subr.bf16.mxu0 0
          %2310 = vmatpush1.bf16.msra.mxu0 %v2292
          %2311 = vmatprep.subr.bf16.mxu0 0
          %2312 = vmatpush1.bf16.msra.mxu0 0
          %2313 = vmatprep.subr.bf16.mxu0 0
          %2314 = vmatpush1.bf16.msra.mxu0 0
          %2315 = vmatprep.subr.bf16.mxu0 0
          %2316 = vmatpush1.bf16.msra.mxu0 0
          %2317 = vmatprep.subr.bf16.mxu0 0
          %2318 = vmatpush1.bf16.msra.mxu0 0
          %2319 = vmatprep.subr.bf16.mxu0 0
          %2320 = vmatpush1.bf16.msra.mxu0 0
          %2321 = vmatprep.subr.bf16.mxu0 0
          %2322 = vmatpush1.bf16.msra.mxu0 0
          %2323 = vmatprep.subr.bf16.mxu0 0
          %2324 = vmatpush1.bf16.msra.mxu0 0
          %2325 = vmatprep.subr.bf16.mxu0 0
          %2326 = vmatpush1.bf16.msra.mxu0 0
          %2327 = vmatprep.subr.bf16.mxu0 0
          %2328 = vmatpush1.bf16.msra.mxu0 0
          %2329 = vmatprep.subr.bf16.mxu0 0
          %2330 = vmatpush1.bf16.msra.mxu0 0
          %2331 = vmatprep.subr.bf16.mxu0 0
          %2332 = vmatpush1.bf16.msra.mxu0 0
          %2333 = vmatprep.subr.bf16.mxu0 0
          %2334 = vmatpush1.bf16.msra.mxu0 0
          %2335 = vmatprep.mubr.bf16.mxu0 0
          %2336 = vmatmul.mubr.bf16.gmra.mrb[0].mxu0 %v2301
          %v2337 = vpop.f32.mrb[0].mxu0
          %v2338 = vadd.f32 %v2297, %v2337
          %v2339 = vpop.f32.mrb[0].mxu0
          %v2340 = vpop.f32.mrb[0].mxu0
          %v2341 = vpop.f32.mrb[0].mxu0
          %2342 = vdwg.mxu0
          %2343 = vst [vmem:[%s606] sm:$0xff] %v2338
        $region89: #{tpu_custom_call.1} parent=76 // pred_fallthru
          _
        %s2344 = sand.u32 %s167, 1
        %s2345 = scalar_lea.sflag [#allocation5], %s2344
        %s2346 = sand.u32 %s167, 1
        %s2347 = smul.addr %s2346, 8
        %s2348 = scalar_lea.vmem [#allocation4], %s2347
        // Predicated region
        $region90: #{tpu_custom_call.1} parent=76 // pred_check
          %p2349 = pneg %p177
        $region91: #{tpu_custom_call.1} parent=76 // pred_check_branch
          %2351 = sbr.rel (%p2349) target = $region93
        $region92: #{tpu_custom_call.1} parent=76 // pred_region
          %s2353 = ssub.s32 128, 128
          %2354 = vsyncadd %s2345, %s2353
          %s2355 = smul.addr %s24, 3
          %s2356 = sadd.s32 %s25, %s2355
          %s2357 = smul.addr %s2356, 128
          %s2358 = scalar_lea.hbm %s5, %s2357
          %s2360 = sshll.u32 %s2348, 4
          %s2361 = int_to_ptr.vmem [resolvable:$true] %s2360
          %2363 = dma.vmem_to_hbm [thread:$0]  %s2361, 128, %s2358, %s2345
        $region93: #{tpu_custom_call.1} parent=76 // pred_fallthru
          _
      $region77: #{tpu_custom_call.1} parent=5 // pred_fallthru
        _
      %p2364 = scmp.le.s32.totalorder 2, %s14
      // Predicated region
      $region94: #{tpu_custom_call.1} parent=5 // pred_check
        %p2365 = pneg %p2364
      $region95: #{tpu_custom_call.1} parent=5 // pred_check_branch
        %2367 = sbr.rel (%p2365) target = $region97
      $region96: #{tpu_custom_call.1} parent=5 // pred_region
        %s2368 = ssub.s32 %s14, 2
        // Predicated region
        $region98: #{tpu_custom_call.1} parent=96 // pred_check
          %p2369 = pneg %p183
        $region99: #{tpu_custom_call.1} parent=96 // pred_check_branch
          %2371 = sbr.rel (%p2369) target = $region101
        $region100: #{tpu_custom_call.1} parent=96 // pred_region
          %s2372 = sand.u32 %s168, 1
          %s2373 = scalar_lea.sflag [#allocation5], %s2372
          %s2374 = sand.u32 %s168, 1
          %s2375 = smul.addr %s2374, 8
          %s2376 = scalar_lea.vmem [#allocation4], %s2375
          %2377 = dma.done %s2373, 128
        $region101: #{tpu_custom_call.1} parent=96 // pred_fallthru
          _
      $region97: #{tpu_custom_call.1} parent=5 // pred_fallthru
        _
    $region6: #{tpu_custom_call.1} parent=1 // loop_footer
      %s18 = sadd.s32 1, %s14
    $region7: #{tpu_custom_call.1} parent=1 // loop_footer_branch
      %13 = sbr.rel target = $region3
    $region8: #{tpu_custom_call.1} parent=1 // loop_exit
      _
    %2378 = vsyncpa [#allocation5], 1
    %s2379 = scalar_lea.sflag [#allocation5], 1
    %2380 = vsyncpa %s2379, 1

</llo_original>
